<compile_context>
chip_gen: v5e
topology: v5e:2x2
jax: 0.10.0
libtpu: 0.0.40
codegen_flags: <defaults>
</compile_context>

<pallas_src>
import jax
import jax.numpy as jnp
import numpy as np
from jax.experimental import pallas as pl
from jax.experimental.pallas import tpu as pltpu


def _round_up(x, m):
    return ((x + m - 1) // m) * m


def _pad2d(x, rows, cols):
    r, c = x.shape
    return jnp.pad(x, ((0, rows - r), (0, cols - c)))


_VMEM_LIMIT = 32 * 1024 * 1024   # explicit limit, portable across 64 MiB / 128 MiB parts
_TILE_M_MAX = 256                # double-buffered (TILE_M, 128) f32 blocks stay << VMEM


def _m_tiling(m):
    tile_m = min(_TILE_M_MAX, _round_up(m, 8))
    mp = _round_up(m, tile_m)
    return tile_m, mp


# ----------------------------------------------------------------------------
# Pallas kernels
# ----------------------------------------------------------------------------
def _conv1x1_bn_relu_kernel(x_ref, w_ref, s_ref, b_ref, o_ref):
    # (TILE_M, Kp) @ (Kp, Np) on the MXU in bf16, f32 accumulation.
    acc = jnp.dot(x_ref[...].astype(jnp.bfloat16), w_ref[...],
                  preferred_element_type=jnp.float32)
    acc = acc * s_ref[...] + b_ref[...]          # folded BatchNorm (scale, shift)
    o_ref[...] = jnp.maximum(acc, 0.0)           # ReLU


def _tail_kernel(p_ref, idn_ref, w2_ref, s2_ref, b2_ref,
                 w3_ref, s3_ref, b3_ref, o_ref):
    # conv2 (3x3, as im2col-row matmul) + bn2 + relu
    h = jnp.dot(p_ref[...].astype(jnp.bfloat16), w2_ref[...],
                preferred_element_type=jnp.float32)
    h = jnp.maximum(h * s2_ref[...] + b2_ref[...], 0.0)
    # conv3 (1x1) + bn3 + identity shortcut + relu, fused (h never touches HBM)
    out = jnp.dot(h.astype(jnp.bfloat16), w3_ref[...],
                  preferred_element_type=jnp.float32)
    out = out * s3_ref[...] + b3_ref[...] + idn_ref[...]
    o_ref[...] = jnp.maximum(out, 0.0)


# ----------------------------------------------------------------------------
# pallas_call wrappers (M-tiled, parallel grid, double-buffered by BlockSpec)
# ----------------------------------------------------------------------------
def conv1x1_bn_relu(x2d, w_p, s_p, b_p, n_valid):
    m, k = x2d.shape
    kp, np_ = w_p.shape
    tile_m, mp = _m_tiling(m)
    xp = _pad2d(x2d.astype(jnp.float32), mp, kp)
    out = pl.pallas_call(
        _conv1x1_bn_relu_kernel,
        out_shape=jax.ShapeDtypeStruct((mp, np_), jnp.float32),
        grid=(mp // tile_m,),
        in_specs=[
            pl.BlockSpec((tile_m, kp), lambda i: (i, 0)),
            pl.BlockSpec((kp, np_), lambda i: (0, 0)),
            pl.BlockSpec((1, np_), lambda i: (0, 0)),
            pl.BlockSpec((1, np_), lambda i: (0, 0)),
        ],
        out_specs=pl.BlockSpec((tile_m, np_), lambda i: (i, 0)),
        compiler_params=pltpu.CompilerParams(
            dimension_semantics=("parallel",),
            vmem_limit_bytes=_VMEM_LIMIT),
    )(xp, w_p, s_p, b_p)
    return out[:m, :n_valid]


def conv3x3_conv1x1_residual(p2, idn, w2_p, s2_p, b2_p, w3_p, s3_p, b3_p, n_valid):
    m, _ = p2.shape
    kp2, np2 = w2_p.shape
    _, np3 = w3_p.shape
    tile_m, mp = _m_tiling(m)
    pp = _pad2d(p2.astype(jnp.float32), mp, kp2)
    idn_p = _pad2d(idn.astype(jnp.float32), mp, np3)
    out = pl.pallas_call(
        _tail_kernel,
        out_shape=jax.ShapeDtypeStruct((mp, np3), jnp.float32),
        grid=(mp // tile_m,),
        in_specs=[
            pl.BlockSpec((tile_m, kp2), lambda i: (i, 0)),   # im2col rows
            pl.BlockSpec((tile_m, np3), lambda i: (i, 0)),   # identity rows
            pl.BlockSpec((kp2, np2), lambda i: (0, 0)),      # W2
            pl.BlockSpec((1, np2), lambda i: (0, 0)),        # bn2 scale
            pl.BlockSpec((1, np2), lambda i: (0, 0)),        # bn2 shift
            pl.BlockSpec((np2, np3), lambda i: (0, 0)),      # W3
            pl.BlockSpec((1, np3), lambda i: (0, 0)),        # bn3 scale
            pl.BlockSpec((1, np3), lambda i: (0, 0)),        # bn3 shift
        ],
        out_specs=pl.BlockSpec((tile_m, np3), lambda i: (i, 0)),
        compiler_params=pltpu.CompilerParams(
            dimension_semantics=("parallel",),
            vmem_limit_bytes=_VMEM_LIMIT),
    )(pp, idn_p, w2_p, s2_p, b2_p, w3_p, s3_p, b3_p)
    return out[:m, :n_valid]


# ----------------------------------------------------------------------------
# One-time parameter preparation (BN folding, weight reshaping, padding, bf16 cast)
# ----------------------------------------------------------------------------
def fold_bn(gamma, beta, mean, var, eps):
    scale = gamma / jnp.sqrt(var + eps)
    shift = beta - mean * scale
    return scale, shift


def prepare_params(raw, eps=1e-5):
    (w1, g1, be1, rm1, rv1,
     w2, g2, be2, rm2, rv2,
     w3, g3, be3, rm3, rv3) = raw
    planes, inplanes = w1.shape[0], w1.shape[1]
    cout = w3.shape[0]

    s1, t1 = fold_bn(g1, be1, rm1, rv1, eps)
    s2, t2 = fold_bn(g2, be2, rm2, rv2, eps)
    s3, t3 = fold_bn(g3, be3, rm3, rv3, eps)

    kp1, np1 = _round_up(inplanes, 128), _round_up(planes, 128)
    kp2, np2 = _round_up(9 * planes, 128), np1
    np3 = _round_up(cout, 128)

    w1m = w1.reshape(planes, inplanes).T                                # (Cin, planes)
    w2m = jnp.transpose(w2, (2, 3, 1, 0)).reshape(9 * planes, planes)   # (9*planes, planes)
    w3m = w3.reshape(cout, planes).T                                    # (planes, Cout)

    return dict(
        planes=planes, inplanes=inplanes, cout=cout,
        w1=_pad2d(w1m, kp1, np1).astype(jnp.bfloat16),
        s1=_pad2d(s1.reshape(1, -1), 1, np1).astype(jnp.float32),
        b1=_pad2d(t1.reshape(1, -1), 1, np1).astype(jnp.float32),
        w2=_pad2d(w2m, kp2, np2).astype(jnp.bfloat16),
        s2=_pad2d(s2.reshape(1, -1), 1, np2).astype(jnp.float32),
        b2=_pad2d(t2.reshape(1, -1), 1, np2).astype(jnp.float32),
        w3=_pad2d(w3m, np2, np3).astype(jnp.bfloat16),
        s3=_pad2d(s3.reshape(1, -1), 1, np3).astype(jnp.float32),
        b3=_pad2d(t3.reshape(1, -1), 1, np3).astype(jnp.float32),
    )


# ----------------------------------------------------------------------------
# Bottleneck forward
# ----------------------------------------------------------------------------
def bottleneck_forward(x_nchw, prep, stride=1, downsample=None):
    # TODO(synk): stride > 1 and a downsample branch are not implemented; this covers
    # the default Bottleneck(inplanes=planes*expansion, planes) identity-shortcut case.
    assert stride == 1 and downsample is None
    b, cin, h, w = x_nchw.shape
    planes, cout = prep["planes"], prep["cout"]
    assert cin == cout, "identity shortcut requires inplanes == planes * expansion"

    x = jnp.transpose(x_nchw, (0, 2, 3, 1))                  # NCHW -> NHWC
    m = b * h * w
    x2d = x.reshape(m, cin)

    # conv1 (1x1) + bn1 + relu -- fused Pallas kernel (no im2col needed for 1x1)
    h1 = conv1x1_bn_relu(x2d, prep["w1"], prep["s1"], prep["b1"], planes)

    # 3x3 patch rows for conv2 (stride 1, padding 1): one spatial pad + 9 shifted views.
    # Kept in XLA glue (tiny tensors); in-kernel patch construction would remove this
    # single HBM round trip.
    h1_img = h1.reshape(b, h, w, planes)
    h1_pad = jnp.pad(h1_img, ((0, 0), (1, 1), (1, 1), (0, 0)))
    taps = [h1_pad[:, di:di + h, dj:dj + w, :]
            for di in range(3) for dj in range(3)]
    p2 = jnp.concatenate(taps, axis=-1).reshape(m, 9 * planes)

    # conv2 + bn2 + relu + conv3 + bn3 + identity + relu -- one fused Pallas kernel
    out2d = conv3x3_conv1x1_residual(
        p2, x2d, prep["w2"], prep["s2"], prep["b2"],
        prep["w3"], prep["s3"], prep["b3"], cout)

    out = out2d.reshape(b, h, w, cout)
    return jnp.transpose(out, (0, 3, 1, 2))                  # NHWC -> NCHW


# ----------------------------------------------------------------------------
# Pure-JAX f32 reference (mirrors the PyTorch Bottleneck forward, BN in eval mode)
# ----------------------------------------------------------------------------
def reference_forward(x, raw, eps=1e-5):
    (w1, g1, be1, rm1, rv1,
     w2, g2, be2, rm2, rv2,
     w3, g3, be3, rm3, rv3) = raw
    dn = ("NCHW", "OIHW", "NCHW")
    hi = jax.lax.Precision.HIGHEST

    def bn(y, g, be, rm, rv):
        return ((y - rm[None, :, None, None]) / jnp.sqrt(rv + eps)[None, :, None, None]
                * g[None, :, None, None] + be[None, :, None, None])

    y = jax.lax.conv_general_dilated(x, w1, (1, 1), "VALID",
                                     dimension_numbers=dn, precision=hi)
    y = jnp.maximum(bn(y, g1, be1, rm1, rv1), 0.0)
    y = jax.lax.conv_general_dilated(y, w2, (1, 1), ((1, 1), (1, 1)),
                                     dimension_numbers=dn, precision=hi)
    y = jnp.maximum(bn(y, g2, be2, rm2, rv2), 0.0)
    y = jax.lax.conv_general_dilated(y, w3, (1, 1), "VALID",
                                     dimension_numbers=dn, precision=hi)
    y = bn(y, g3, be3, rm3, rv3)
    return jnp.maximum(y + x, 0.0)


if __name__ == "__main__":
    key = jax.random.PRNGKey(0)
    ks = jax.random.split(key, 8)

    B, planes = 2, 4
    inplanes = planes * 4          # expansion = 4 (required when downsample is None)
    H = W = 16

    def uconv(k, shape):
        fan_in = shape[1] * shape[2] * shape[3]
        bound = 1.0 / np.sqrt(fan_in)
        return jax.random.uniform(k, shape, jnp.float32, -bound, bound)

    def bn_params(k, c):
        k1, k2, k3, k4 = jax.random.split(k, 4)
        gamma = jax.random.uniform(k1, (c,), jnp.float32, 0.5, 1.5)
        beta = jax.random.uniform(k2, (c,), jnp.float32, -0.5, 0.5)
        rmean = jax.random.uniform(k3, (c,), jnp.float32, -0.5, 0.5)
        rvar = jax.random.uniform(k4, (c,), jnp.float32, 0.5, 1.5)
        return gamma, beta, rmean, rvar

    w1 = uconv(ks[1], (planes, inplanes, 1, 1))
    w2 = uconv(ks[2], (planes, planes, 3, 3))
    w3 = uconv(ks[3], (planes * 4, planes, 1, 1))
    g1, be1, rm1, rv1 = bn_params(ks[4], planes)
    g2, be2, rm2, rv2 = bn_params(ks[5], planes)
    g3, be3, rm3, rv3 = bn_params(ks[6], planes * 4)

    raw = (w1, g1, be1, rm1, rv1, w2, g2, be2, rm2, rv2, w3, g3, be3, rm3, rv3)
    prep = prepare_params(raw)

    x = jax.random.normal(ks[0], (B, inplanes, H, W), jnp.float32)

    fwd = jax.jit(lambda xx: bottleneck_forward(xx, prep))
    out = jax.block_until_ready(fwd(x))

    ref = reference_forward(x, raw)
    out_np, ref_np = np.asarray(out), np.asarray(ref)
    assert out_np.shape == (B, inplanes, H, W)
    np.testing.assert_allclose(out_np, ref_np, atol=5e-2, rtol=5e-2)
    assert np.mean(np.abs(out_np - ref_np)) < 1e-2   # bf16-MXU / f32-accumulate error budget

    print("KERNEL_OK")
</pallas_src>

<mosaic_0001>
module attributes {stable_mosaic.version = 11 : i64} {
  func.func @_conv1x1_bn_relu_kernel(%arg0: i32, %arg1: memref<256x128xf32, #tpu.memory_space<vmem>>, %arg2: memref<128x128xbf16, #tpu.memory_space<vmem>>, %arg3: memref<1x128xf32, #tpu.memory_space<vmem>>, %arg4: memref<1x128xf32, #tpu.memory_space<vmem>>, %arg5: memref<256x128xf32, #tpu.memory_space<vmem>>) attributes {dimension_semantics = [#tpu.dimension_semantics<parallel>], iteration_bounds = array<i64: 2>, scalar_prefetch = 0 : i64, scratch_operands = 0 : i64, tpu.core_type = #tpu.core_type<tc>, window_params = [{transform_indices = @transform_0, window_bounds = array<i64: 256, 128>}, {pipeline_mode = #tpu.pipeline_mode<synchronous>, transform_indices = @transform_1, window_bounds = array<i64: 128, 128>}, {pipeline_mode = #tpu.pipeline_mode<synchronous>, transform_indices = @transform_2, window_bounds = array<i64: 1, 128>}, {pipeline_mode = #tpu.pipeline_mode<synchronous>, transform_indices = @transform_3, window_bounds = array<i64: 1, 128>}, {transform_indices = @transform_4, window_bounds = array<i64: 256, 128>}]} {
    %c0 = arith.constant 0 : index
    %c0_0 = arith.constant 0 : index
    %0 = vector.load %arg1[%c0, %c0_0] : memref<256x128xf32, #tpu.memory_space<vmem>>, vector<256x128xf32>
    %1 = arith.truncf %0 : vector<256x128xf32> to vector<256x128xbf16>
    %c0_1 = arith.constant 0 : index
    %c0_2 = arith.constant 0 : index
    %2 = vector.load %arg2[%c0_1, %c0_2] : memref<128x128xbf16, #tpu.memory_space<vmem>>, vector<128x128xbf16>
    %cst = arith.constant dense<0.000000e+00> : vector<256x128xf32>
    %3 = tpu.matmul %1, %2, %cst {dimension_numbers = #tpu.dot_dimension_numbers<[1], [0], [0], [1], [0, 0, 1, 1], [], []>} : vector<256x128xbf16>, vector<128x128xbf16>, vector<256x128xf32> -> vector<256x128xf32>
    %c0_3 = arith.constant 0 : index
    %c0_4 = arith.constant 0 : index
    %4 = vector.load %arg3[%c0_3, %c0_4] : memref<1x128xf32, #tpu.memory_space<vmem>>, vector<1x128xf32>
    %5 = vector.broadcast %4 : vector<1x128xf32> to vector<256x128xf32>
    %6 = arith.mulf %3, %5 : vector<256x128xf32>
    %c0_5 = arith.constant 0 : index
    %c0_6 = arith.constant 0 : index
    %7 = vector.load %arg4[%c0_5, %c0_6] : memref<1x128xf32, #tpu.memory_space<vmem>>, vector<1x128xf32>
    %8 = vector.broadcast %7 : vector<1x128xf32> to vector<256x128xf32>
    %9 = arith.addf %6, %8 : vector<256x128xf32>
    %cst_7 = arith.constant 0.000000e+00 : f32
    %10 = vector.broadcast %cst_7 : f32 to vector<256x128xf32>
    %11 = arith.maximumf %9, %10 : vector<256x128xf32>
    %c0_8 = arith.constant 0 : index
    %c0_9 = arith.constant 0 : index
    %12 = vector.load %arg5[%c0_8, %c0_9] : memref<256x128xf32, #tpu.memory_space<vmem>>, vector<256x128xf32>
    tpu.vector_store %arg5[%c0_8, %c0_9], %11 {strides = array<i32>} : memref<256x128xf32, #tpu.memory_space<vmem>>, vector<256x128xf32>,
    return
  }
  func.func @transform_0(%arg0: i32) -> (i32, i32) {
    %c0_i32 = arith.constant 0 : i32
    %c0_i32_0 = arith.constant 0 : i32
    return %arg0, %c0_i32 : i32, i32
  }
  func.func @transform_1(%arg0: i32) -> (i32, i32) {
    %c0_i32 = arith.constant 0 : i32
    %c0_i32_0 = arith.constant 0 : i32
    %c0_i32_1 = arith.constant 0 : i32
    return %c0_i32, %c0_i32_0 : i32, i32
  }
  func.func @transform_2(%arg0: i32) -> (i32, i32) {
    %c0_i32 = arith.constant 0 : i32
    %c0_i32_0 = arith.constant 0 : i32
    %c0_i32_1 = arith.constant 0 : i32
    return %c0_i32, %c0_i32_0 : i32, i32
  }
  func.func @transform_3(%arg0: i32) -> (i32, i32) {
    %c0_i32 = arith.constant 0 : i32
    %c0_i32_0 = arith.constant 0 : i32
    %c0_i32_1 = arith.constant 0 : i32
    return %c0_i32, %c0_i32_0 : i32, i32
  }
  func.func @transform_4(%arg0: i32) -> (i32, i32) {
    %c0_i32 = arith.constant 0 : i32
    %c0_i32_0 = arith.constant 0 : i32
    return %arg0, %c0_i32 : i32, i32
  }
}

module attributes {stable_mosaic.version = 11 : i64} {
  func.func @_tail_kernel(%arg0: i32, %arg1: memref<256x128xf32, #tpu.memory_space<vmem>>, %arg2: memref<256x128xf32, #tpu.memory_space<vmem>>, %arg3: memref<128x128xbf16, #tpu.memory_space<vmem>>, %arg4: memref<1x128xf32, #tpu.memory_space<vmem>>, %arg5: memref<1x128xf32, #tpu.memory_space<vmem>>, %arg6: memref<128x128xbf16, #tpu.memory_space<vmem>>, %arg7: memref<1x128xf32, #tpu.memory_space<vmem>>, %arg8: memref<1x128xf32, #tpu.memory_space<vmem>>, %arg9: memref<256x128xf32, #tpu.memory_space<vmem>>) attributes {dimension_semantics = [#tpu.dimension_semantics<parallel>], iteration_bounds = array<i64: 2>, scalar_prefetch = 0 : i64, scratch_operands = 0 : i64, tpu.core_type = #tpu.core_type<tc>, window_params = [{transform_indices = @transform_0, window_bounds = array<i64: 256, 128>}, {transform_indices = @transform_1, window_bounds = array<i64: 256, 128>}, {pipeline_mode = #tpu.pipeline_mode<synchronous>, transform_indices = @transform_2, window_bounds = array<i64: 128, 128>}, {pipeline_mode = #tpu.pipeline_mode<synchronous>, transform_indices = @transform_3, window_bounds = array<i64: 1, 128>}, {pipeline_mode = #tpu.pipeline_mode<synchronous>, transform_indices = @transform_4, window_bounds = array<i64: 1, 128>}, {pipeline_mode = #tpu.pipeline_mode<synchronous>, transform_indices = @transform_5, window_bounds = array<i64: 128, 128>}, {pipeline_mode = #tpu.pipeline_mode<synchronous>, transform_indices = @transform_6, window_bounds = array<i64: 1, 128>}, {pipeline_mode = #tpu.pipeline_mode<synchronous>, transform_indices = @transform_7, window_bounds = array<i64: 1, 128>}, {transform_indices = @transform_8, window_bounds = array<i64: 256, 128>}]} {
    %c0 = arith.constant 0 : index
    %c0_0 = arith.constant 0 : index
    %0 = vector.load %arg1[%c0, %c0_0] : memref<256x128xf32, #tpu.memory_space<vmem>>, vector<256x128xf32>
    %1 = arith.truncf %0 : vector<256x128xf32> to vector<256x128xbf16>
    %c0_1 = arith.constant 0 : index
    %c0_2 = arith.constant 0 : index
    %2 = vector.load %arg3[%c0_1, %c0_2] : memref<128x128xbf16, #tpu.memory_space<vmem>>, vector<128x128xbf16>
    %cst = arith.constant dense<0.000000e+00> : vector<256x128xf32>
    %3 = tpu.matmul %1, %2, %cst {dimension_numbers = #tpu.dot_dimension_numbers<[1], [0], [0], [1], [0, 0, 1, 1], [], []>} : vector<256x128xbf16>, vector<128x128xbf16>, vector<256x128xf32> -> vector<256x128xf32>
    %c0_3 = arith.constant 0 : index
    %c0_4 = arith.constant 0 : index
    %4 = vector.load %arg4[%c0_3, %c0_4] : memref<1x128xf32, #tpu.memory_space<vmem>>, vector<1x128xf32>
    %5 = vector.broadcast %4 : vector<1x128xf32> to vector<256x128xf32>
    %6 = arith.mulf %3, %5 : vector<256x128xf32>
    %c0_5 = arith.constant 0 : index
    %c0_6 = arith.constant 0 : index
    %7 = vector.load %arg5[%c0_5, %c0_6] : memref<1x128xf32, #tpu.memory_space<vmem>>, vector<1x128xf32>
    %8 = vector.broadcast %7 : vector<1x128xf32> to vector<256x128xf32>
    %9 = arith.addf %6, %8 : vector<256x128xf32>
    %cst_7 = arith.constant 0.000000e+00 : f32
    %10 = vector.broadcast %cst_7 : f32 to vector<256x128xf32>
    %11 = arith.maximumf %9, %10 : vector<256x128xf32>
    %12 = arith.truncf %11 : vector<256x128xf32> to vector<256x128xbf16>
    %c0_8 = arith.constant 0 : index
    %c0_9 = arith.constant 0 : index
    %13 = vector.load %arg6[%c0_8, %c0_9] : memref<128x128xbf16, #tpu.memory_space<vmem>>, vector<128x128xbf16>
    %cst_10 = arith.constant dense<0.000000e+00> : vector<256x128xf32>
    %14 = tpu.matmul %12, %13, %cst_10 {dimension_numbers = #tpu.dot_dimension_numbers<[1], [0], [0], [1], [0, 0, 1, 1], [], []>} : vector<256x128xbf16>, vector<128x128xbf16>, vector<256x128xf32> -> vector<256x128xf32>
    %c0_11 = arith.constant 0 : index
    %c0_12 = arith.constant 0 : index
    %15 = vector.load %arg7[%c0_11, %c0_12] : memref<1x128xf32, #tpu.memory_space<vmem>>, vector<1x128xf32>
    %16 = vector.broadcast %15 : vector<1x128xf32> to vector<256x128xf32>
    %17 = arith.mulf %14, %16 : vector<256x128xf32>
    %c0_13 = arith.constant 0 : index
    %c0_14 = arith.constant 0 : index
    %18 = vector.load %arg8[%c0_13, %c0_14] : memref<1x128xf32, #tpu.memory_space<vmem>>, vector<1x128xf32>
    %19 = vector.broadcast %18 : vector<1x128xf32> to vector<256x128xf32>
    %20 = arith.addf %17, %19 : vector<256x128xf32>
    %c0_15 = arith.constant 0 : index
    %c0_16 = arith.constant 0 : index
    %21 = vector.load %arg2[%c0_15, %c0_16] : memref<256x128xf32, #tpu.memory_space<vmem>>, vector<256x128xf32>
    %22 = arith.addf %20, %21 : vector<256x128xf32>
    %cst_17 = arith.constant 0.000000e+00 : f32
    %23 = vector.broadcast %cst_17 : f32 to vector<256x128xf32>
    %24 = arith.maximumf %22, %23 : vector<256x128xf32>
    %c0_18 = arith.constant 0 : index
    %c0_19 = arith.constant 0 : index
    %25 = vector.load %arg9[%c0_18, %c0_19] : memref<256x128xf32, #tpu.memory_space<vmem>>, vector<256x128xf32>
    tpu.vector_store %arg9[%c0_18, %c0_19], %24 {strides = array<i32>} : memref<256x128xf32, #tpu.memory_space<vmem>>, vector<256x128xf32>,
    return
  }
  func.func @transform_0(%arg0: i32) -> (i32, i32) {
    %c0_i32 = arith.constant 0 : i32
    %c0_i32_0 = arith.constant 0 : i32
    return %arg0, %c0_i32 : i32, i32
  }
  func.func @transform_1(%arg0: i32) -> (i32, i32) {
    %c0_i32 = arith.constant 0 : i32
    %c0_i32_0 = arith.constant 0 : i32
    return %arg0, %c0_i32 : i32, i32
  }
  func.func @transform_2(%arg0: i32) -> (i32, i32) {
    %c0_i32 = arith.constant 0 : i32
    %c0_i32_0 = arith.constant 0 : i32
    %c0_i32_1 = arith.constant 0 : i32
    return %c0_i32, %c0_i32_0 : i32, i32
  }
  func.func @transform_3(%arg0: i32) -> (i32, i32) {
    %c0_i32 = arith.constant 0 : i32
    %c0_i32_0 = arith.constant 0 : i32
    %c0_i32_1 = arith.constant 0 : i32
    return %c0_i32, %c0_i32_0 : i32, i32
  }
  func.func @transform_4(%arg0: i32) -> (i32, i32) {
    %c0_i32 = arith.constant 0 : i32
    %c0_i32_0 = arith.constant 0 : i32
    %c0_i32_1 = arith.constant 0 : i32
    return %c0_i32, %c0_i32_0 : i32, i32
  }
  func.func @transform_5(%arg0: i32) -> (i32, i32) {
    %c0_i32 = arith.constant 0 : i32
    %c0_i32_0 = arith.constant 0 : i32
    %c0_i32_1 = arith.constant 0 : i32
    return %c0_i32, %c0_i32_0 : i32, i32
  }
  func.func @transform_6(%arg0: i32) -> (i32, i32) {
    %c0_i32 = arith.constant 0 : i32
    %c0_i32_0 = arith.constant 0 : i32
    %c0_i32_1 = arith.constant 0 : i32
    return %c0_i32, %c0_i32_0 : i32, i32
  }
  func.func @transform_7(%arg0: i32) -> (i32, i32) {
    %c0_i32 = arith.constant 0 : i32
    %c0_i32_0 = arith.constant 0 : i32
    %c0_i32_1 = arith.constant 0 : i32
    return %c0_i32, %c0_i32_0 : i32, i32
  }
  func.func @transform_8(%arg0: i32) -> (i32, i32) {
    %c0_i32 = arith.constant 0 : i32
    %c0_i32_0 = arith.constant 0 : i32
    return %arg0, %c0_i32 : i32, i32
  }
}

</mosaic_0001>

<llo_original>
// kernel: _lambda_.2
$region0: #{_lambda_.2}
  #allocation0 [shape = 'u32[]', space=smem, size = 0x4, offset = 0x4, fixed_abs, tag = 'smem constant byte address 0x4 - core index']
  #allocation1 [shape = 'u32[72,128]{1,0:T(1,128)}', space=vmem, size = 0x9000, scoped, tag = 'internal scratch']
  %s0 = inlined_call_operand.vmem [shape: f32[512,128], index: 0, kind: input, shape index: {}]
  %s1 = inlined_call_operand.vmem [shape: bf16[128,128], index: 1, kind: input, shape index: {}]
  %s2 = inlined_call_operand.vmem [shape: f32[1,128], index: 2, kind: input, shape index: {}]
  %s3 = inlined_call_operand.vmem [shape: f32[1,128], index: 3, kind: input, shape index: {}]
  %s4 = inlined_call_operand.vmem [shape: f32[512,128], index: 4, kind: output, shape index: {}]
  %s5 = sld [smem:[#allocation0]]
  $region49: #{_lambda_.2} parent=0
    _
  %s7 = ssub.s32 1, %s5
  %s8 = scalar_select 0, %s7, %s5
  loop: start=0, step=1, limit=4
  $region2: #{_lambda_.2} parent=0 // loop_pre_header
    _
  $region3: #{_lambda_.2} parent=0 // loop_header
    %s10 = sphi 0, %s14
    %p11 = scmp.ge.s32.totalorder %s10, 4
    %s20 = sphi 0, %s22
    %s23 = sphi 0, %s20
    %s24 = sphi 0, %s23
    %s40 = sphi 0, %s24
    %s44 = sphi 0, %s44
    %s46 = sphi 0, %s44
    %s47 = sphi 0, %s46
    %s61 = sphi 0, %s47
    %s65 = sphi 0, %s65
    %s67 = sphi 0, %s65
    %s68 = sphi 0, %s67
    %s82 = sphi 0, %s68
    %s86 = sphi 0, %s86
    %s88 = sphi 0, %s86
    %s89 = sphi 0, %s88
    %s103 = sphi 0, %s89
    %s109 = sphi 0, %s111
    %s112 = sphi 0, %s109
    %s113 = sphi 0, %s112
    %s129 = sphi 0, %s113
  $region4: #{_lambda_.2} parent=0 // loop_header_branch
    %13 = sbr.rel (%p11) target = $region8
  $region5: #{_lambda_.2} parent=0 // loop_body
    %s15 = ssub.s32 %s10, 1
    %s16 = ssub.s32 %s10, 2
    %s17 = sadd.s32 %s10, 1
    %s18 = ssub.s32 %s10, %s17
    %p19 = scmp.eq.s32.totalorder %s18, 0
    %s21 = sadd.s32 %s20, 1
    %s22 = scalar_select %p19, %s20, %s21
    %p25 = pneg %p19
    %p26 = scmp.eq.s32.totalorder %s10, 1
    %p27 = por %p25, %p26
    %p28 = scmp.ne.s32.totalorder %s20, %s23
    %p29 = scmp.eq.s32.totalorder %s10, 0
    %p30 = por %p28, %p29
    %p31 = scmp.ne.s32.totalorder %s20, %s23
    %p32 = scmp.eq.s32.totalorder %s15, 1
    %p33 = por %p31, %p32
    %p34 = scmp.ne.s32.totalorder %s23, %s24
    %p35 = scmp.eq.s32.totalorder %s15, 0
    %p36 = por %p34, %p35
    %p37 = scmp.ne.s32.totalorder %s23, %s24
    %p38 = scmp.eq.s32.totalorder %s16, 1
    %p39 = por %p37, %p38
    %p41 = scmp.ne.s32.totalorder %s24, %s40
    %p42 = scmp.eq.s32.totalorder %s16, 0
    %p43 = por %p41, %p42
    %s45 = sadd.s32 %s44, 1
    %p48 = scmp.eq.s32.totalorder %s10, 1
    %p49 = scmp.ne.s32.totalorder %s44, %s46
    %p50 = scmp.eq.s32.totalorder %s10, 0
    %p51 = por %p49, %p50
    %p52 = scmp.ne.s32.totalorder %s44, %s46
    %p53 = scmp.eq.s32.totalorder %s15, 1
    %p54 = por %p52, %p53
    %p55 = scmp.ne.s32.totalorder %s46, %s47
    %p56 = scmp.eq.s32.totalorder %s15, 0
    %p57 = por %p55, %p56
    %p58 = scmp.ne.s32.totalorder %s46, %s47
    %p59 = scmp.eq.s32.totalorder %s16, 1
    %p60 = por %p58, %p59
    %p62 = scmp.ne.s32.totalorder %s47, %s61
    %p63 = scmp.eq.s32.totalorder %s16, 0
    %p64 = por %p62, %p63
    %s66 = sadd.s32 %s65, 1
    %p69 = scmp.eq.s32.totalorder %s10, 1
    %p70 = scmp.ne.s32.totalorder %s65, %s67
    %p71 = scmp.eq.s32.totalorder %s10, 0
    %p72 = por %p70, %p71
    %p73 = scmp.ne.s32.totalorder %s65, %s67
    %p74 = scmp.eq.s32.totalorder %s15, 1
    %p75 = por %p73, %p74
    %p76 = scmp.ne.s32.totalorder %s67, %s68
    %p77 = scmp.eq.s32.totalorder %s15, 0
    %p78 = por %p76, %p77
    %p79 = scmp.ne.s32.totalorder %s67, %s68
    %p80 = scmp.eq.s32.totalorder %s16, 1
    %p81 = por %p79, %p80
    %p83 = scmp.ne.s32.totalorder %s68, %s82
    %p84 = scmp.eq.s32.totalorder %s16, 0
    %p85 = por %p83, %p84
    %s87 = sadd.s32 %s86, 1
    %p90 = scmp.eq.s32.totalorder %s10, 1
    %p91 = scmp.ne.s32.totalorder %s86, %s88
    %p92 = scmp.eq.s32.totalorder %s10, 0
    %p93 = por %p91, %p92
    %p94 = scmp.ne.s32.totalorder %s86, %s88
    %p95 = scmp.eq.s32.totalorder %s15, 1
    %p96 = por %p94, %p95
    %p97 = scmp.ne.s32.totalorder %s88, %s89
    %p98 = scmp.eq.s32.totalorder %s15, 0
    %p99 = por %p97, %p98
    %p100 = scmp.ne.s32.totalorder %s88, %s89
    %p101 = scmp.eq.s32.totalorder %s16, 1
    %p102 = por %p100, %p101
    %p104 = scmp.ne.s32.totalorder %s89, %s103
    %p105 = scmp.eq.s32.totalorder %s16, 0
    %p106 = por %p104, %p105
    %s107 = ssub.s32 %s10, %s17
    %p108 = scmp.eq.s32.totalorder %s107, 0
    %s110 = sadd.s32 %s109, 1
    %s111 = scalar_select %p108, %s109, %s110
    %p114 = pneg %p108
    %p115 = scmp.eq.s32.totalorder %s10, 1
    %p116 = por %p114, %p115
    %p117 = scmp.ne.s32.totalorder %s109, %s112
    %p118 = scmp.eq.s32.totalorder %s10, 0
    %p119 = por %p117, %p118
    %p120 = scmp.ne.s32.totalorder %s109, %s112
    %p121 = scmp.eq.s32.totalorder %s15, 1
    %p122 = por %p120, %p121
    %p123 = scmp.ne.s32.totalorder %s112, %s113
    %p124 = scmp.eq.s32.totalorder %s15, 0
    %p125 = por %p123, %p124
    %p126 = scmp.ne.s32.totalorder %s112, %s113
    %p127 = scmp.eq.s32.totalorder %s16, 1
    %p128 = por %p126, %p127
    %p130 = scmp.ne.s32.totalorder %s113, %s129
    %p131 = scmp.eq.s32.totalorder %s16, 0
    %p132 = por %p130, %p131
    %p133 = scmp.le.s32.totalorder 1, %s10
    %p134 = scmp.lt.s32.totalorder %s10, 3
    %p135 = pnand %p133, %p134
    %p136 = pneg %p135
    // Predicated region
    $region9: #{_lambda_.2} parent=5 // pred_check
      _
    $region10: #{_lambda_.2} parent=5 // pred_check_branch
      %138 = sbr.rel (%p135) target = $region12
    $region11: #{_lambda_.2} parent=5 // pred_region
      %s139 = ssub.s32 %s10, 1
      // Predicated region
      $region13: #{_lambda_.2} parent=11 // pred_check
        %p140 = pneg %p57
      $region14: #{_lambda_.2} parent=11 // pred_check_branch
        %142 = sbr.rel (%p140) target = $region16
      $region15: #{_lambda_.2} parent=11 // pred_region
        _
      $region16: #{_lambda_.2} parent=11 // pred_fallthru
        _
      // Predicated region
      $region17: #{_lambda_.2} parent=11 // pred_check
        %p143 = pneg %p78
      $region18: #{_lambda_.2} parent=11 // pred_check_branch
        %145 = sbr.rel (%p143) target = $region20
      $region19: #{_lambda_.2} parent=11 // pred_region
        _
      $region20: #{_lambda_.2} parent=11 // pred_fallthru
        _
      // Predicated region
      $region21: #{_lambda_.2} parent=11 // pred_check
        %p146 = pneg %p99
      $region22: #{_lambda_.2} parent=11 // pred_check_branch
        %148 = sbr.rel (%p146) target = $region24
      $region23: #{_lambda_.2} parent=11 // pred_region
        _
      $region24: #{_lambda_.2} parent=11 // pred_fallthru
        _
    $region12: #{_lambda_.2} parent=5 // pred_fallthru
      _
    %p149 = scmp.lt.s32.totalorder %s10, 2
    // Predicated region
    $region25: #{_lambda_.2} parent=5 // pred_check
      %p150 = pneg %p149
    $region26: #{_lambda_.2} parent=5 // pred_check_branch
      %152 = sbr.rel (%p150) target = $region28
    $region27: #{_lambda_.2} parent=5 // pred_region
      // Predicated region
      $region29: #{_lambda_.2} parent=27 // pred_check
        %p153 = pneg %p30
      $region30: #{_lambda_.2} parent=27 // pred_check_branch
        %155 = sbr.rel (%p153) target = $region32
      $region31: #{_lambda_.2} parent=27 // pred_region
        %s156 = smul.u32 32, %s10
        %p157 = scmp.lt.s32.totalorder %s156, 63
        %s158 = scalar_select %p157, %s156, 63
        %s159 = smul.addr %s158, 8
        %s160 = scalar_lea.vmem %s0, %s159
        %s161 = smul.u32 32, %s10
      $region32: #{_lambda_.2} parent=27 // pred_fallthru
        _
    $region28: #{_lambda_.2} parent=5 // pred_fallthru
      _
    %p162 = scmp.le.s32.totalorder 1, %s10
    %p163 = scmp.lt.s32.totalorder %s10, 3
    %p164 = pnand %p162, %p163
    %p165 = pneg %p164
    // Predicated region
    $region33: #{_lambda_.2} parent=5 // pred_check
      _
    $region34: #{_lambda_.2} parent=5 // pred_check_branch
      %167 = sbr.rel (%p164) target = $region36
    $region35: #{_lambda_.2} parent=5 // pred_region
      %s168 = ssub.s32 %s10, 1
      %s169 = smul.u32 32, %s15
      %p170 = scmp.lt.s32.totalorder %s169, 63
      %s171 = scalar_select %p170, %s169, 63
      %s172 = smul.addr %s171, 8
      %s173 = scalar_lea.vmem %s0, %s172
      %p174 = pneg %p36
      %p175 = pneg %p33
      %p176 = pneg %p57
      %p177 = pneg %p54
      %p178 = pneg %p78
      %p179 = pneg %p75
      %p180 = pneg %p99
      %p181 = pneg %p96
      %p182 = pneg %p125
      %p183 = pneg %p122
      %s184 = smul.u32 32, %s15
      %p185 = scmp.lt.s32.totalorder %s184, 63
      %s186 = scalar_select %p185, %s184, 63
      %s187 = smul.addr %s186, 8
      %s188 = scalar_lea.vmem %s4, %s187
      %s189 = smul.u32 32, %s15
      %p190 = scmp.lt.s32.totalorder %s189, 63
      %s191 = scalar_select %p190, %s189, 63
      %s192 = smul.addr %s191, 8
      %s193 = scalar_lea.vmem %s0, %s192
      %s194 = smul.u32 32, %s15
      %s195 = smul.u32 32, %s15
      %p196 = scmp.lt.s32.totalorder %s195, 63
      %s197 = scalar_select %p196, %s195, 63
      %s198 = smul.addr %s197, 8
      %s199 = scalar_lea.vmem %s4, %s198
      %s200 = smul.u32 32, %s15
      %v201 = vld [vmem:[%s193] sm:$0xff]
      %v202 = vld [vmem:[%s193 + $0x8] sm:$0xff]
      %v203 = vld [vmem:[%s193 + $0x10] sm:$0xff]
      %v204 = vld [vmem:[%s193 + $0x18] sm:$0xff]
      %v205 = vld [vmem:[%s193 + $0x20] sm:$0xff]
      %v206 = vld [vmem:[%s193 + $0x28] sm:$0xff]
      %v207 = vld [vmem:[%s193 + $0x30] sm:$0xff]
      %v208 = vld [vmem:[%s193 + $0x38] sm:$0xff]
      %v209 = vld [vmem:[%s193 + $0x40] sm:$0xff]
      %v210 = vld [vmem:[%s193 + $0x48] sm:$0xff]
      %v211 = vld [vmem:[%s193 + $0x50] sm:$0xff]
      %v212 = vld [vmem:[%s193 + $0x58] sm:$0xff]
      %v213 = vld [vmem:[%s193 + $0x60] sm:$0xff]
      %v214 = vld [vmem:[%s193 + $0x68] sm:$0xff]
      %v215 = vld [vmem:[%s193 + $0x70] sm:$0xff]
      %v216 = vld [vmem:[%s193 + $0x78] sm:$0xff]
      %v217 = vld [vmem:[%s193 + $0x80] sm:$0xff]
      %v218 = vld [vmem:[%s193 + $0x88] sm:$0xff]
      %v219 = vld [vmem:[%s193 + $0x90] sm:$0xff]
      %v220 = vld [vmem:[%s193 + $0x98] sm:$0xff]
      %v221 = vld [vmem:[%s193 + $0xa0] sm:$0xff]
      %v222 = vld [vmem:[%s193 + $0xa8] sm:$0xff]
      %v223 = vld [vmem:[%s193 + $0xb0] sm:$0xff]
      %v224 = vld [vmem:[%s193 + $0xb8] sm:$0xff]
      %v225 = vld [vmem:[%s193 + $0xc0] sm:$0xff]
      %v226 = vld [vmem:[%s193 + $0xc8] sm:$0xff]
      %v227 = vld [vmem:[%s193 + $0xd0] sm:$0xff]
      %v228 = vld [vmem:[%s193 + $0xd8] sm:$0xff]
      %v229 = vld [vmem:[%s193 + $0xe0] sm:$0xff]
      %v230 = vld [vmem:[%s193 + $0xe8] sm:$0xff]
      %v231 = vld [vmem:[%s193 + $0xf0] sm:$0xff]
      %v232 = vld [vmem:[%s193 + $0xf8] sm:$0xff]
      %v233 = vpack.c.bf16 %v202, %v201
      %v234 = vpack.c.bf16 %v204, %v203
      %v235 = vpack.c.bf16 %v206, %v205
      %v236 = vpack.c.bf16 %v208, %v207
      %v237 = vpack.c.bf16 %v210, %v209
      %v238 = vpack.c.bf16 %v212, %v211
      %v239 = vpack.c.bf16 %v214, %v213
      %v240 = vpack.c.bf16 %v216, %v215
      %v241 = vpack.c.bf16 %v218, %v217
      %v242 = vpack.c.bf16 %v220, %v219
      %v243 = vpack.c.bf16 %v222, %v221
      %v244 = vpack.c.bf16 %v224, %v223
      %v245 = vpack.c.bf16 %v226, %v225
      %v246 = vpack.c.bf16 %v228, %v227
      %v247 = vpack.c.bf16 %v230, %v229
      %v248 = vpack.c.bf16 %v232, %v231
      %v249 = vld [vmem:[%s1] sm:$0xf]
      %v250 = vld [vmem:[%s1 + $0x4] sm:$0xf]
      %v251 = vld [vmem:[%s1 + $0x8] sm:$0xf]
      %v252 = vld [vmem:[%s1 + $0xc] sm:$0xf]
      %v253 = vld [vmem:[%s1 + $0x10] sm:$0xf]
      %v254 = vld [vmem:[%s1 + $0x14] sm:$0xf]
      %v255 = vld [vmem:[%s1 + $0x18] sm:$0xf]
      %v256 = vld [vmem:[%s1 + $0x1c] sm:$0xf]
      %v257 = vld [vmem:[%s1 + $0x20] sm:$0xf]
      %v258 = vld [vmem:[%s1 + $0x24] sm:$0xf]
      %v259 = vld [vmem:[%s1 + $0x28] sm:$0xf]
      %v260 = vld [vmem:[%s1 + $0x2c] sm:$0xf]
      %v261 = vld [vmem:[%s1 + $0x30] sm:$0xf]
      %v262 = vld [vmem:[%s1 + $0x34] sm:$0xf]
      %v263 = vld [vmem:[%s1 + $0x38] sm:$0xf]
      %v264 = vld [vmem:[%s1 + $0x3c] sm:$0xf]
      %v281 = vunpack.c.l.b16 %v249
      %v282 = vunpack.c.l.b16 %v250
      %v283 = vunpack.c.l.b16 %v251
      %v284 = vunpack.c.l.b16 %v252
      %v285 = vunpack.c.l.b16 %v253
      %v286 = vunpack.c.l.b16 %v254
      %v287 = vunpack.c.l.b16 %v255
      %v288 = vunpack.c.l.b16 %v256
      %v289 = vunpack.c.l.b16 %v257
      %v290 = vunpack.c.l.b16 %v258
      %v291 = vunpack.c.l.b16 %v259
      %v292 = vunpack.c.l.b16 %v260
      %v293 = vunpack.c.l.b16 %v261
      %v294 = vunpack.c.l.b16 %v262
      %v295 = vunpack.c.l.b16 %v263
      %v296 = vunpack.c.l.b16 %v264
      %v297 = vpack.c.b16 %v282, %v281
      %v298 = vpack.c.b16 %v284, %v283
      %v299 = vpack.c.b16 %v286, %v285
      %v300 = vpack.c.b16 %v288, %v287
      %v301 = vpack.c.b16 %v290, %v289
      %v302 = vpack.c.b16 %v292, %v291
      %v303 = vpack.c.b16 %v294, %v293
      %v304 = vpack.c.b16 %v296, %v295
      %313 = vmatpush.bf16.msra.mxu0 %v304
      %314 = vmatpush.bf16.msra.mxu0 %v303
      %315 = vmatpush.bf16.msra.mxu0 %v302
      %316 = vmatpush.bf16.msra.mxu0 %v301
      %317 = vmatpush.bf16.msra.mxu0 %v300
      %318 = vmatpush.bf16.msra.mxu0 %v299
      %319 = vmatpush.bf16.msra.mxu0 %v298
      %320 = vmatpush.bf16.msra.mxu0 %v297
      %321 = vmatmul.bf16.gmra.mxu0 %v233
      %v322 = vpop.f32.mrf.mxu0
      %v323 = vadd.f32 0.0, %v322
      %v324 = vpop.f32.mrf.mxu0
      %v325 = vadd.f32 0.0, %v324
      %326 = vmatmul.bf16.gmra.mxu0 %v234
      %v327 = vpop.f32.mrf.mxu0
      %v328 = vadd.f32 0.0, %v327
      %v329 = vpop.f32.mrf.mxu0
      %v330 = vadd.f32 0.0, %v329
      %331 = vmatmul.bf16.gmra.mxu0 %v235
      %v332 = vpop.f32.mrf.mxu0
      %v333 = vadd.f32 0.0, %v332
      %v334 = vpop.f32.mrf.mxu0
      %v335 = vadd.f32 0.0, %v334
      %336 = vmatmul.bf16.gmra.mxu0 %v236
      %v337 = vpop.f32.mrf.mxu0
      %v338 = vadd.f32 0.0, %v337
      %v339 = vpop.f32.mrf.mxu0
      %v340 = vadd.f32 0.0, %v339
      %341 = vmatmul.bf16.gmra.mxu0 %v237
      %v342 = vpop.f32.mrf.mxu0
      %v343 = vadd.f32 0.0, %v342
      %v344 = vpop.f32.mrf.mxu0
      %v345 = vadd.f32 0.0, %v344
      %346 = vmatmul.bf16.gmra.mxu0 %v238
      %v347 = vpop.f32.mrf.mxu0
      %v348 = vadd.f32 0.0, %v347
      %v349 = vpop.f32.mrf.mxu0
      %v350 = vadd.f32 0.0, %v349
      %351 = vmatmul.bf16.gmra.mxu0 %v239
      %v352 = vpop.f32.mrf.mxu0
      %v353 = vadd.f32 0.0, %v352
      %v354 = vpop.f32.mrf.mxu0
      %v355 = vadd.f32 0.0, %v354
      %356 = vmatmul.bf16.gmra.mxu0 %v240
      %v357 = vpop.f32.mrf.mxu0
      %v358 = vadd.f32 0.0, %v357
      %v359 = vpop.f32.mrf.mxu0
      %v360 = vadd.f32 0.0, %v359
      %361 = vmatmul.bf16.gmra.mxu0 %v241
      %v362 = vpop.f32.mrf.mxu0
      %v363 = vadd.f32 0.0, %v362
      %v364 = vpop.f32.mrf.mxu0
      %v365 = vadd.f32 0.0, %v364
      %366 = vmatmul.bf16.gmra.mxu0 %v242
      %v367 = vpop.f32.mrf.mxu0
      %v368 = vadd.f32 0.0, %v367
      %v369 = vpop.f32.mrf.mxu0
      %v370 = vadd.f32 0.0, %v369
      %371 = vmatmul.bf16.gmra.mxu0 %v243
      %v372 = vpop.f32.mrf.mxu0
      %v373 = vadd.f32 0.0, %v372
      %v374 = vpop.f32.mrf.mxu0
      %v375 = vadd.f32 0.0, %v374
      %376 = vmatmul.bf16.gmra.mxu0 %v244
      %v377 = vpop.f32.mrf.mxu0
      %v378 = vadd.f32 0.0, %v377
      %v379 = vpop.f32.mrf.mxu0
      %v380 = vadd.f32 0.0, %v379
      %381 = vmatmul.bf16.gmra.mxu0 %v245
      %v382 = vpop.f32.mrf.mxu0
      %v383 = vadd.f32 0.0, %v382
      %v384 = vpop.f32.mrf.mxu0
      %v385 = vadd.f32 0.0, %v384
      %386 = vmatmul.bf16.gmra.mxu0 %v246
      %v387 = vpop.f32.mrf.mxu0
      %v388 = vadd.f32 0.0, %v387
      %v389 = vpop.f32.mrf.mxu0
      %v390 = vadd.f32 0.0, %v389
      %391 = vmatmul.bf16.gmra.mxu0 %v247
      %v392 = vpop.f32.mrf.mxu0
      %v393 = vadd.f32 0.0, %v392
      %v394 = vpop.f32.mrf.mxu0
      %v395 = vadd.f32 0.0, %v394
      %396 = vmatmul.bf16.gmra.mxu0 %v248
      %v397 = vpop.f32.mrf.mxu0
      %v398 = vadd.f32 0.0, %v397
      %v399 = vpop.f32.mrf.mxu0
      %v400 = vadd.f32 0.0, %v399
      %401 = vdwg.mxu0
      %v402 = vld [vmem:[%s2] sm:$0x1]
      %v404 = vperm.slane %v402, 0
      %v406 = vmul.f32 %v323, %v404
      %v407 = vmul.f32 %v325, %v404
      %v408 = vmul.f32 %v328, %v404
      %v409 = vmul.f32 %v330, %v404
      %v410 = vmul.f32 %v333, %v404
      %v411 = vmul.f32 %v335, %v404
      %v412 = vmul.f32 %v338, %v404
      %v413 = vmul.f32 %v340, %v404
      %v414 = vmul.f32 %v343, %v404
      %v415 = vmul.f32 %v345, %v404
      %v416 = vmul.f32 %v348, %v404
      %v417 = vmul.f32 %v350, %v404
      %v418 = vmul.f32 %v353, %v404
      %v419 = vmul.f32 %v355, %v404
      %v420 = vmul.f32 %v358, %v404
      %v421 = vmul.f32 %v360, %v404
      %v422 = vmul.f32 %v363, %v404
      %v423 = vmul.f32 %v365, %v404
      %v424 = vmul.f32 %v368, %v404
      %v425 = vmul.f32 %v370, %v404
      %v426 = vmul.f32 %v373, %v404
      %v427 = vmul.f32 %v375, %v404
      %v428 = vmul.f32 %v378, %v404
      %v429 = vmul.f32 %v380, %v404
      %v430 = vmul.f32 %v383, %v404
      %v431 = vmul.f32 %v385, %v404
      %v432 = vmul.f32 %v388, %v404
      %v433 = vmul.f32 %v390, %v404
      %v434 = vmul.f32 %v393, %v404
      %v435 = vmul.f32 %v395, %v404
      %v436 = vmul.f32 %v398, %v404
      %v437 = vmul.f32 %v400, %v404
      %v438 = vld [vmem:[%s3] sm:$0x1]
      %v440 = vperm.slane %v438, 0
      %v442 = vadd.f32 %v406, %v440
      %v443 = vadd.f32 %v407, %v440
      %v444 = vadd.f32 %v408, %v440
      %v445 = vadd.f32 %v409, %v440
      %v446 = vadd.f32 %v410, %v440
      %v447 = vadd.f32 %v411, %v440
      %v448 = vadd.f32 %v412, %v440
      %v449 = vadd.f32 %v413, %v440
      %v450 = vadd.f32 %v414, %v440
      %v451 = vadd.f32 %v415, %v440
      %v452 = vadd.f32 %v416, %v440
      %v453 = vadd.f32 %v417, %v440
      %v454 = vadd.f32 %v418, %v440
      %v455 = vadd.f32 %v419, %v440
      %v456 = vadd.f32 %v420, %v440
      %v457 = vadd.f32 %v421, %v440
      %v458 = vadd.f32 %v422, %v440
      %v459 = vadd.f32 %v423, %v440
      %v460 = vadd.f32 %v424, %v440
      %v461 = vadd.f32 %v425, %v440
      %v462 = vadd.f32 %v426, %v440
      %v463 = vadd.f32 %v427, %v440
      %v464 = vadd.f32 %v428, %v440
      %v465 = vadd.f32 %v429, %v440
      %v466 = vadd.f32 %v430, %v440
      %v467 = vadd.f32 %v431, %v440
      %v468 = vadd.f32 %v432, %v440
      %v469 = vadd.f32 %v433, %v440
      %v470 = vadd.f32 %v434, %v440
      %v471 = vadd.f32 %v435, %v440
      %v472 = vadd.f32 %v436, %v440
      %v473 = vadd.f32 %v437, %v440
      %v474 = vmax.f32 %v442, 0.0
      %v475 = vmax.f32 %v443, 0.0
      %v476 = vmax.f32 %v444, 0.0
      %v477 = vmax.f32 %v445, 0.0
      %v478 = vmax.f32 %v446, 0.0
      %v479 = vmax.f32 %v447, 0.0
      %v480 = vmax.f32 %v448, 0.0
      %v481 = vmax.f32 %v449, 0.0
      %v482 = vmax.f32 %v450, 0.0
      %v483 = vmax.f32 %v451, 0.0
      %v484 = vmax.f32 %v452, 0.0
      %v485 = vmax.f32 %v453, 0.0
      %v486 = vmax.f32 %v454, 0.0
      %v487 = vmax.f32 %v455, 0.0
      %v488 = vmax.f32 %v456, 0.0
      %v489 = vmax.f32 %v457, 0.0
      %v490 = vmax.f32 %v458, 0.0
      %v491 = vmax.f32 %v459, 0.0
      %v492 = vmax.f32 %v460, 0.0
      %v493 = vmax.f32 %v461, 0.0
      %v494 = vmax.f32 %v462, 0.0
      %v495 = vmax.f32 %v463, 0.0
      %v496 = vmax.f32 %v464, 0.0
      %v497 = vmax.f32 %v465, 0.0
      %v498 = vmax.f32 %v466, 0.0
      %v499 = vmax.f32 %v467, 0.0
      %v500 = vmax.f32 %v468, 0.0
      %v501 = vmax.f32 %v469, 0.0
      %v502 = vmax.f32 %v470, 0.0
      %v503 = vmax.f32 %v471, 0.0
      %v504 = vmax.f32 %v472, 0.0
      %v505 = vmax.f32 %v473, 0.0
      %506 = vst [vmem:[%s199] sm:$0xff] %v474
      %507 = vst [vmem:[%s199 + $0x8] sm:$0xff] %v475
      %508 = vst [vmem:[%s199 + $0x10] sm:$0xff] %v476
      %509 = vst [vmem:[%s199 + $0x18] sm:$0xff] %v477
      %510 = vst [vmem:[%s199 + $0x20] sm:$0xff] %v478
      %511 = vst [vmem:[%s199 + $0x28] sm:$0xff] %v479
      %512 = vst [vmem:[%s199 + $0x30] sm:$0xff] %v480
      %513 = vst [vmem:[%s199 + $0x38] sm:$0xff] %v481
      %514 = vst [vmem:[%s199 + $0x40] sm:$0xff] %v482
      %515 = vst [vmem:[%s199 + $0x48] sm:$0xff] %v483
      %516 = vst [vmem:[%s199 + $0x50] sm:$0xff] %v484
      %517 = vst [vmem:[%s199 + $0x58] sm:$0xff] %v485
      %518 = vst [vmem:[%s199 + $0x60] sm:$0xff] %v486
      %519 = vst [vmem:[%s199 + $0x68] sm:$0xff] %v487
      %520 = vst [vmem:[%s199 + $0x70] sm:$0xff] %v488
      %521 = vst [vmem:[%s199 + $0x78] sm:$0xff] %v489
      %522 = vst [vmem:[%s199 + $0x80] sm:$0xff] %v490
      %523 = vst [vmem:[%s199 + $0x88] sm:$0xff] %v491
      %524 = vst [vmem:[%s199 + $0x90] sm:$0xff] %v492
      %525 = vst [vmem:[%s199 + $0x98] sm:$0xff] %v493
      %526 = vst [vmem:[%s199 + $0xa0] sm:$0xff] %v494
      %527 = vst [vmem:[%s199 + $0xa8] sm:$0xff] %v495
      %528 = vst [vmem:[%s199 + $0xb0] sm:$0xff] %v496
      %529 = vst [vmem:[%s199 + $0xb8] sm:$0xff] %v497
      %530 = vst [vmem:[%s199 + $0xc0] sm:$0xff] %v498
      %531 = vst [vmem:[%s199 + $0xc8] sm:$0xff] %v499
      %532 = vst [vmem:[%s199 + $0xd0] sm:$0xff] %v500
      %533 = vst [vmem:[%s199 + $0xd8] sm:$0xff] %v501
      %534 = vst [vmem:[%s199 + $0xe0] sm:$0xff] %v502
      %535 = vst [vmem:[%s199 + $0xe8] sm:$0xff] %v503
      %536 = vst [vmem:[%s199 + $0xf0] sm:$0xff] %v504
      %537 = vst [vmem:[%s199 + $0xf8] sm:$0xff] %v505
      %s538 = smul.u32 32, %s15
      %p539 = scmp.lt.s32.totalorder %s538, 63
      %s540 = scalar_select %p539, %s538, 63
      %s541 = smul.addr %s540, 8
      %s542 = scalar_lea.vmem %s4, %s541
      // Predicated region
      $region37: #{_lambda_.2} parent=35 // pred_check
        %p543 = pneg %p122
      $region38: #{_lambda_.2} parent=35 // pred_check_branch
        %545 = sbr.rel (%p543) target = $region40
      $region39: #{_lambda_.2} parent=35 // pred_region
        %s546 = smul.u32 32, %s15
      $region40: #{_lambda_.2} parent=35 // pred_fallthru
        _
    $region36: #{_lambda_.2} parent=5 // pred_fallthru
      _
    %p547 = scmp.le.s32.totalorder 2, %s10
    // Predicated region
    $region41: #{_lambda_.2} parent=5 // pred_check
      %p548 = pneg %p547
    $region42: #{_lambda_.2} parent=5 // pred_check_branch
      %550 = sbr.rel (%p548) target = $region44
    $region43: #{_lambda_.2} parent=5 // pred_region
      %s551 = ssub.s32 %s10, 2
      // Predicated region
      $region45: #{_lambda_.2} parent=43 // pred_check
        %p552 = pneg %p128
      $region46: #{_lambda_.2} parent=43 // pred_check_branch
        %554 = sbr.rel (%p552) target = $region48
      $region47: #{_lambda_.2} parent=43 // pred_region
        %s555 = smul.u32 32, %s16
        %p556 = scmp.lt.s32.totalorder %s555, 63
        %s557 = scalar_select %p556, %s555, 63
        %s558 = smul.addr %s557, 8
        %s559 = scalar_lea.vmem %s4, %s558
      $region48: #{_lambda_.2} parent=43 // pred_fallthru
        _
    $region44: #{_lambda_.2} parent=5 // pred_fallthru
      _
  $region6: #{_lambda_.2} parent=0 // loop_footer
    %s14 = sadd.s32 1, %s10
  $region7: #{_lambda_.2} parent=0 // loop_footer_branch
    %9 = sbr.rel target = $region3
  $region8: #{_lambda_.2} parent=0 // loop_exit
    _

// kernel: _lambda_.3
$region0: #{_lambda_.3}
  #allocation0 [shape = 'u32[]', space=smem, size = 0x4, offset = 0x4, fixed_abs, tag = 'smem constant byte address 0x4 - core index']
  #allocation1 [shape = 'u32[72,128]{1,0:T(1,128)}', space=vmem, size = 0x9000, scoped, tag = 'internal scratch']
  %s0 = inlined_call_operand.vmem [shape: f32[512,128], index: 0, kind: input, shape index: {}]
  %s1 = inlined_call_operand.vmem [shape: f32[512,128], index: 1, kind: input, shape index: {}]
  %s2 = inlined_call_operand.vmem [shape: bf16[128,128], index: 2, kind: input, shape index: {}]
  %s3 = inlined_call_operand.vmem [shape: f32[1,128], index: 3, kind: input, shape index: {}]
  %s4 = inlined_call_operand.vmem [shape: f32[1,128], index: 4, kind: input, shape index: {}]
  %s5 = inlined_call_operand.vmem [shape: bf16[128,128], index: 5, kind: input, shape index: {}]
  %s6 = inlined_call_operand.vmem [shape: f32[1,128], index: 6, kind: input, shape index: {}]
  %s7 = inlined_call_operand.vmem [shape: f32[1,128], index: 7, kind: input, shape index: {}]
  %s8 = inlined_call_operand.vmem [shape: f32[512,128], index: 8, kind: output, shape index: {}]
  %s9 = sld [smem:[#allocation0]]
  $region65: #{_lambda_.3} parent=0
    _
  %s11 = ssub.s32 1, %s9
  %s12 = scalar_select 0, %s11, %s9
  loop: start=0, step=1, limit=4
  $region2: #{_lambda_.3} parent=0 // loop_pre_header
    _
  $region3: #{_lambda_.3} parent=0 // loop_header
    %s14 = sphi 0, %s18
    %p15 = scmp.ge.s32.totalorder %s14, 4
    %s24 = sphi 0, %s26
    %s27 = sphi 0, %s24
    %s28 = sphi 0, %s27
    %s44 = sphi 0, %s28
    %s50 = sphi 0, %s52
    %s53 = sphi 0, %s50
    %s54 = sphi 0, %s53
    %s70 = sphi 0, %s54
    %s74 = sphi 0, %s74
    %s76 = sphi 0, %s74
    %s77 = sphi 0, %s76
    %s91 = sphi 0, %s77
    %s95 = sphi 0, %s95
    %s97 = sphi 0, %s95
    %s98 = sphi 0, %s97
    %s112 = sphi 0, %s98
    %s116 = sphi 0, %s116
    %s118 = sphi 0, %s116
    %s119 = sphi 0, %s118
    %s133 = sphi 0, %s119
    %s137 = sphi 0, %s137
    %s139 = sphi 0, %s137
    %s140 = sphi 0, %s139
    %s154 = sphi 0, %s140
    %s158 = sphi 0, %s158
    %s160 = sphi 0, %s158
    %s161 = sphi 0, %s160
    %s175 = sphi 0, %s161
    %s179 = sphi 0, %s179
    %s181 = sphi 0, %s179
    %s182 = sphi 0, %s181
    %s196 = sphi 0, %s182
    %s202 = sphi 0, %s204
    %s205 = sphi 0, %s202
    %s206 = sphi 0, %s205
    %s222 = sphi 0, %s206
  $region4: #{_lambda_.3} parent=0 // loop_header_branch
    %17 = sbr.rel (%p15) target = $region8
  $region5: #{_lambda_.3} parent=0 // loop_body
    %s19 = ssub.s32 %s14, 1
    %s20 = ssub.s32 %s14, 2
    %s21 = sadd.s32 %s14, 1
    %s22 = ssub.s32 %s14, %s21
    %p23 = scmp.eq.s32.totalorder %s22, 0
    %s25 = sadd.s32 %s24, 1
    %s26 = scalar_select %p23, %s24, %s25
    %p29 = pneg %p23
    %p30 = scmp.eq.s32.totalorder %s14, 1
    %p31 = por %p29, %p30
    %p32 = scmp.ne.s32.totalorder %s24, %s27
    %p33 = scmp.eq.s32.totalorder %s14, 0
    %p34 = por %p32, %p33
    %p35 = scmp.ne.s32.totalorder %s24, %s27
    %p36 = scmp.eq.s32.totalorder %s19, 1
    %p37 = por %p35, %p36
    %p38 = scmp.ne.s32.totalorder %s27, %s28
    %p39 = scmp.eq.s32.totalorder %s19, 0
    %p40 = por %p38, %p39
    %p41 = scmp.ne.s32.totalorder %s27, %s28
    %p42 = scmp.eq.s32.totalorder %s20, 1
    %p43 = por %p41, %p42
    %p45 = scmp.ne.s32.totalorder %s28, %s44
    %p46 = scmp.eq.s32.totalorder %s20, 0
    %p47 = por %p45, %p46
    %s48 = ssub.s32 %s14, %s21
    %p49 = scmp.eq.s32.totalorder %s48, 0
    %s51 = sadd.s32 %s50, 1
    %s52 = scalar_select %p49, %s50, %s51
    %p55 = pneg %p49
    %p56 = scmp.eq.s32.totalorder %s14, 1
    %p57 = por %p55, %p56
    %p58 = scmp.ne.s32.totalorder %s50, %s53
    %p59 = scmp.eq.s32.totalorder %s14, 0
    %p60 = por %p58, %p59
    %p61 = scmp.ne.s32.totalorder %s50, %s53
    %p62 = scmp.eq.s32.totalorder %s19, 1
    %p63 = por %p61, %p62
    %p64 = scmp.ne.s32.totalorder %s53, %s54
    %p65 = scmp.eq.s32.totalorder %s19, 0
    %p66 = por %p64, %p65
    %p67 = scmp.ne.s32.totalorder %s53, %s54
    %p68 = scmp.eq.s32.totalorder %s20, 1
    %p69 = por %p67, %p68
    %p71 = scmp.ne.s32.totalorder %s54, %s70
    %p72 = scmp.eq.s32.totalorder %s20, 0
    %p73 = por %p71, %p72
    %s75 = sadd.s32 %s74, 1
    %p78 = scmp.eq.s32.totalorder %s14, 1
    %p79 = scmp.ne.s32.totalorder %s74, %s76
    %p80 = scmp.eq.s32.totalorder %s14, 0
    %p81 = por %p79, %p80
    %p82 = scmp.ne.s32.totalorder %s74, %s76
    %p83 = scmp.eq.s32.totalorder %s19, 1
    %p84 = por %p82, %p83
    %p85 = scmp.ne.s32.totalorder %s76, %s77
    %p86 = scmp.eq.s32.totalorder %s19, 0
    %p87 = por %p85, %p86
    %p88 = scmp.ne.s32.totalorder %s76, %s77
    %p89 = scmp.eq.s32.totalorder %s20, 1
    %p90 = por %p88, %p89
    %p92 = scmp.ne.s32.totalorder %s77, %s91
    %p93 = scmp.eq.s32.totalorder %s20, 0
    %p94 = por %p92, %p93
    %s96 = sadd.s32 %s95, 1
    %p99 = scmp.eq.s32.totalorder %s14, 1
    %p100 = scmp.ne.s32.totalorder %s95, %s97
    %p101 = scmp.eq.s32.totalorder %s14, 0
    %p102 = por %p100, %p101
    %p103 = scmp.ne.s32.totalorder %s95, %s97
    %p104 = scmp.eq.s32.totalorder %s19, 1
    %p105 = por %p103, %p104
    %p106 = scmp.ne.s32.totalorder %s97, %s98
    %p107 = scmp.eq.s32.totalorder %s19, 0
    %p108 = por %p106, %p107
    %p109 = scmp.ne.s32.totalorder %s97, %s98
    %p110 = scmp.eq.s32.totalorder %s20, 1
    %p111 = por %p109, %p110
    %p113 = scmp.ne.s32.totalorder %s98, %s112
    %p114 = scmp.eq.s32.totalorder %s20, 0
    %p115 = por %p113, %p114
    %s117 = sadd.s32 %s116, 1
    %p120 = scmp.eq.s32.totalorder %s14, 1
    %p121 = scmp.ne.s32.totalorder %s116, %s118
    %p122 = scmp.eq.s32.totalorder %s14, 0
    %p123 = por %p121, %p122
    %p124 = scmp.ne.s32.totalorder %s116, %s118
    %p125 = scmp.eq.s32.totalorder %s19, 1
    %p126 = por %p124, %p125
    %p127 = scmp.ne.s32.totalorder %s118, %s119
    %p128 = scmp.eq.s32.totalorder %s19, 0
    %p129 = por %p127, %p128
    %p130 = scmp.ne.s32.totalorder %s118, %s119
    %p131 = scmp.eq.s32.totalorder %s20, 1
    %p132 = por %p130, %p131
    %p134 = scmp.ne.s32.totalorder %s119, %s133
    %p135 = scmp.eq.s32.totalorder %s20, 0
    %p136 = por %p134, %p135
    %s138 = sadd.s32 %s137, 1
    %p141 = scmp.eq.s32.totalorder %s14, 1
    %p142 = scmp.ne.s32.totalorder %s137, %s139
    %p143 = scmp.eq.s32.totalorder %s14, 0
    %p144 = por %p142, %p143
    %p145 = scmp.ne.s32.totalorder %s137, %s139
    %p146 = scmp.eq.s32.totalorder %s19, 1
    %p147 = por %p145, %p146
    %p148 = scmp.ne.s32.totalorder %s139, %s140
    %p149 = scmp.eq.s32.totalorder %s19, 0
    %p150 = por %p148, %p149
    %p151 = scmp.ne.s32.totalorder %s139, %s140
    %p152 = scmp.eq.s32.totalorder %s20, 1
    %p153 = por %p151, %p152
    %p155 = scmp.ne.s32.totalorder %s140, %s154
    %p156 = scmp.eq.s32.totalorder %s20, 0
    %p157 = por %p155, %p156
    %s159 = sadd.s32 %s158, 1
    %p162 = scmp.eq.s32.totalorder %s14, 1
    %p163 = scmp.ne.s32.totalorder %s158, %s160
    %p164 = scmp.eq.s32.totalorder %s14, 0
    %p165 = por %p163, %p164
    %p166 = scmp.ne.s32.totalorder %s158, %s160
    %p167 = scmp.eq.s32.totalorder %s19, 1
    %p168 = por %p166, %p167
    %p169 = scmp.ne.s32.totalorder %s160, %s161
    %p170 = scmp.eq.s32.totalorder %s19, 0
    %p171 = por %p169, %p170
    %p172 = scmp.ne.s32.totalorder %s160, %s161
    %p173 = scmp.eq.s32.totalorder %s20, 1
    %p174 = por %p172, %p173
    %p176 = scmp.ne.s32.totalorder %s161, %s175
    %p177 = scmp.eq.s32.totalorder %s20, 0
    %p178 = por %p176, %p177
    %s180 = sadd.s32 %s179, 1
    %p183 = scmp.eq.s32.totalorder %s14, 1
    %p184 = scmp.ne.s32.totalorder %s179, %s181
    %p185 = scmp.eq.s32.totalorder %s14, 0
    %p186 = por %p184, %p185
    %p187 = scmp.ne.s32.totalorder %s179, %s181
    %p188 = scmp.eq.s32.totalorder %s19, 1
    %p189 = por %p187, %p188
    %p190 = scmp.ne.s32.totalorder %s181, %s182
    %p191 = scmp.eq.s32.totalorder %s19, 0
    %p192 = por %p190, %p191
    %p193 = scmp.ne.s32.totalorder %s181, %s182
    %p194 = scmp.eq.s32.totalorder %s20, 1
    %p195 = por %p193, %p194
    %p197 = scmp.ne.s32.totalorder %s182, %s196
    %p198 = scmp.eq.s32.totalorder %s20, 0
    %p199 = por %p197, %p198
    %s200 = ssub.s32 %s14, %s21
    %p201 = scmp.eq.s32.totalorder %s200, 0
    %s203 = sadd.s32 %s202, 1
    %s204 = scalar_select %p201, %s202, %s203
    %p207 = pneg %p201
    %p208 = scmp.eq.s32.totalorder %s14, 1
    %p209 = por %p207, %p208
    %p210 = scmp.ne.s32.totalorder %s202, %s205
    %p211 = scmp.eq.s32.totalorder %s14, 0
    %p212 = por %p210, %p211
    %p213 = scmp.ne.s32.totalorder %s202, %s205
    %p214 = scmp.eq.s32.totalorder %s19, 1
    %p215 = por %p213, %p214
    %p216 = scmp.ne.s32.totalorder %s205, %s206
    %p217 = scmp.eq.s32.totalorder %s19, 0
    %p218 = por %p216, %p217
    %p219 = scmp.ne.s32.totalorder %s205, %s206
    %p220 = scmp.eq.s32.totalorder %s20, 1
    %p221 = por %p219, %p220
    %p223 = scmp.ne.s32.totalorder %s206, %s222
    %p224 = scmp.eq.s32.totalorder %s20, 0
    %p225 = por %p223, %p224
    %p226 = scmp.le.s32.totalorder 1, %s14
    %p227 = scmp.lt.s32.totalorder %s14, 3
    %p228 = pnand %p226, %p227
    %p229 = pneg %p228
    // Predicated region
    $region9: #{_lambda_.3} parent=5 // pred_check
      _
    $region10: #{_lambda_.3} parent=5 // pred_check_branch
      %231 = sbr.rel (%p228) target = $region12
    $region11: #{_lambda_.3} parent=5 // pred_region
      %s232 = ssub.s32 %s14, 1
      // Predicated region
      $region13: #{_lambda_.3} parent=11 // pred_check
        %p233 = pneg %p87
      $region14: #{_lambda_.3} parent=11 // pred_check_branch
        %235 = sbr.rel (%p233) target = $region16
      $region15: #{_lambda_.3} parent=11 // pred_region
        _
      $region16: #{_lambda_.3} parent=11 // pred_fallthru
        _
      // Predicated region
      $region17: #{_lambda_.3} parent=11 // pred_check
        %p236 = pneg %p108
      $region18: #{_lambda_.3} parent=11 // pred_check_branch
        %238 = sbr.rel (%p236) target = $region20
      $region19: #{_lambda_.3} parent=11 // pred_region
        _
      $region20: #{_lambda_.3} parent=11 // pred_fallthru
        _
      // Predicated region
      $region21: #{_lambda_.3} parent=11 // pred_check
        %p239 = pneg %p129
      $region22: #{_lambda_.3} parent=11 // pred_check_branch
        %241 = sbr.rel (%p239) target = $region24
      $region23: #{_lambda_.3} parent=11 // pred_region
        _
      $region24: #{_lambda_.3} parent=11 // pred_fallthru
        _
      // Predicated region
      $region25: #{_lambda_.3} parent=11 // pred_check
        %p242 = pneg %p150
      $region26: #{_lambda_.3} parent=11 // pred_check_branch
        %244 = sbr.rel (%p242) target = $region28
      $region27: #{_lambda_.3} parent=11 // pred_region
        _
      $region28: #{_lambda_.3} parent=11 // pred_fallthru
        _
      // Predicated region
      $region29: #{_lambda_.3} parent=11 // pred_check
        %p245 = pneg %p171
      $region30: #{_lambda_.3} parent=11 // pred_check_branch
        %247 = sbr.rel (%p245) target = $region32
      $region31: #{_lambda_.3} parent=11 // pred_region
        _
      $region32: #{_lambda_.3} parent=11 // pred_fallthru
        _
      // Predicated region
      $region33: #{_lambda_.3} parent=11 // pred_check
        %p248 = pneg %p192
      $region34: #{_lambda_.3} parent=11 // pred_check_branch
        %250 = sbr.rel (%p248) target = $region36
      $region35: #{_lambda_.3} parent=11 // pred_region
        _
      $region36: #{_lambda_.3} parent=11 // pred_fallthru
        _
    $region12: #{_lambda_.3} parent=5 // pred_fallthru
      _
    %p251 = scmp.lt.s32.totalorder %s14, 2
    // Predicated region
    $region37: #{_lambda_.3} parent=5 // pred_check
      %p252 = pneg %p251
    $region38: #{_lambda_.3} parent=5 // pred_check_branch
      %254 = sbr.rel (%p252) target = $region40
    $region39: #{_lambda_.3} parent=5 // pred_region
      // Predicated region
      $region41: #{_lambda_.3} parent=39 // pred_check
        %p255 = pneg %p34
      $region42: #{_lambda_.3} parent=39 // pred_check_branch
        %257 = sbr.rel (%p255) target = $region44
      $region43: #{_lambda_.3} parent=39 // pred_region
        %s258 = smul.u32 32, %s14
        %p259 = scmp.lt.s32.totalorder %s258, 63
        %s260 = scalar_select %p259, %s258, 63
        %s261 = smul.addr %s260, 8
        %s262 = scalar_lea.vmem %s0, %s261
        %s263 = smul.u32 32, %s14
      $region44: #{_lambda_.3} parent=39 // pred_fallthru
        _
      // Predicated region
      $region45: #{_lambda_.3} parent=39 // pred_check
        %p264 = pneg %p60
      $region46: #{_lambda_.3} parent=39 // pred_check_branch
        %266 = sbr.rel (%p264) target = $region48
      $region47: #{_lambda_.3} parent=39 // pred_region
        %s267 = smul.u32 32, %s14
        %p268 = scmp.lt.s32.totalorder %s267, 63
        %s269 = scalar_select %p268, %s267, 63
        %s270 = smul.addr %s269, 8
        %s271 = scalar_lea.vmem %s1, %s270
        %s272 = smul.u32 32, %s14
      $region48: #{_lambda_.3} parent=39 // pred_fallthru
        _
    $region40: #{_lambda_.3} parent=5 // pred_fallthru
      _
    %p273 = scmp.le.s32.totalorder 1, %s14
    %p274 = scmp.lt.s32.totalorder %s14, 3
    %p275 = pnand %p273, %p274
    %p276 = pneg %p275
    // Predicated region
    $region49: #{_lambda_.3} parent=5 // pred_check
      _
    $region50: #{_lambda_.3} parent=5 // pred_check_branch
      %278 = sbr.rel (%p275) target = $region52
    $region51: #{_lambda_.3} parent=5 // pred_region
      %s279 = ssub.s32 %s14, 1
      %s280 = smul.u32 32, %s19
      %p281 = scmp.lt.s32.totalorder %s280, 63
      %s282 = scalar_select %p281, %s280, 63
      %s283 = smul.addr %s282, 8
      %s284 = scalar_lea.vmem %s0, %s283
      %p285 = pneg %p40
      %p286 = pneg %p37
      %s287 = smul.u32 32, %s19
      %p288 = scmp.lt.s32.totalorder %s287, 63
      %s289 = scalar_select %p288, %s287, 63
      %s290 = smul.addr %s289, 8
      %s291 = scalar_lea.vmem %s1, %s290
      %p292 = pneg %p66
      %p293 = pneg %p63
      %p294 = pneg %p87
      %p295 = pneg %p84
      %p296 = pneg %p108
      %p297 = pneg %p105
      %p298 = pneg %p129
      %p299 = pneg %p126
      %p300 = pneg %p150
      %p301 = pneg %p147
      %p302 = pneg %p171
      %p303 = pneg %p168
      %p304 = pneg %p192
      %p305 = pneg %p189
      %p306 = pneg %p218
      %p307 = pneg %p215
      %s308 = smul.u32 32, %s19
      %p309 = scmp.lt.s32.totalorder %s308, 63
      %s310 = scalar_select %p309, %s308, 63
      %s311 = smul.addr %s310, 8
      %s312 = scalar_lea.vmem %s8, %s311
      %s313 = smul.u32 32, %s19
      %p314 = scmp.lt.s32.totalorder %s313, 63
      %s315 = scalar_select %p314, %s313, 63
      %s316 = smul.addr %s315, 8
      %s317 = scalar_lea.vmem %s0, %s316
      %s318 = smul.u32 32, %s19
      %s319 = smul.u32 32, %s19
      %p320 = scmp.lt.s32.totalorder %s319, 63
      %s321 = scalar_select %p320, %s319, 63
      %s322 = smul.addr %s321, 8
      %s323 = scalar_lea.vmem %s1, %s322
      %s324 = smul.u32 32, %s19
      %s325 = smul.u32 32, %s19
      %p326 = scmp.lt.s32.totalorder %s325, 63
      %s327 = scalar_select %p326, %s325, 63
      %s328 = smul.addr %s327, 8
      %s329 = scalar_lea.vmem %s8, %s328
      %s330 = smul.u32 32, %s19
      %v331 = vld [vmem:[%s317] sm:$0xff]
      %v332 = vld [vmem:[%s317 + $0x8] sm:$0xff]
      %v333 = vld [vmem:[%s317 + $0x10] sm:$0xff]
      %v334 = vld [vmem:[%s317 + $0x18] sm:$0xff]
      %v335 = vld [vmem:[%s317 + $0x20] sm:$0xff]
      %v336 = vld [vmem:[%s317 + $0x28] sm:$0xff]
      %v337 = vld [vmem:[%s317 + $0x30] sm:$0xff]
      %v338 = vld [vmem:[%s317 + $0x38] sm:$0xff]
      %v339 = vld [vmem:[%s317 + $0x40] sm:$0xff]
      %v340 = vld [vmem:[%s317 + $0x48] sm:$0xff]
      %v341 = vld [vmem:[%s317 + $0x50] sm:$0xff]
      %v342 = vld [vmem:[%s317 + $0x58] sm:$0xff]
      %v343 = vld [vmem:[%s317 + $0x60] sm:$0xff]
      %v344 = vld [vmem:[%s317 + $0x68] sm:$0xff]
      %v345 = vld [vmem:[%s317 + $0x70] sm:$0xff]
      %v346 = vld [vmem:[%s317 + $0x78] sm:$0xff]
      %v347 = vld [vmem:[%s317 + $0x80] sm:$0xff]
      %v348 = vld [vmem:[%s317 + $0x88] sm:$0xff]
      %v349 = vld [vmem:[%s317 + $0x90] sm:$0xff]
      %v350 = vld [vmem:[%s317 + $0x98] sm:$0xff]
      %v351 = vld [vmem:[%s317 + $0xa0] sm:$0xff]
      %v352 = vld [vmem:[%s317 + $0xa8] sm:$0xff]
      %v353 = vld [vmem:[%s317 + $0xb0] sm:$0xff]
      %v354 = vld [vmem:[%s317 + $0xb8] sm:$0xff]
      %v355 = vld [vmem:[%s317 + $0xc0] sm:$0xff]
      %v356 = vld [vmem:[%s317 + $0xc8] sm:$0xff]
      %v357 = vld [vmem:[%s317 + $0xd0] sm:$0xff]
      %v358 = vld [vmem:[%s317 + $0xd8] sm:$0xff]
      %v359 = vld [vmem:[%s317 + $0xe0] sm:$0xff]
      %v360 = vld [vmem:[%s317 + $0xe8] sm:$0xff]
      %v361 = vld [vmem:[%s317 + $0xf0] sm:$0xff]
      %v362 = vld [vmem:[%s317 + $0xf8] sm:$0xff]
      %v363 = vpack.c.bf16 %v332, %v331
      %v364 = vpack.c.bf16 %v334, %v333
      %v365 = vpack.c.bf16 %v336, %v335
      %v366 = vpack.c.bf16 %v338, %v337
      %v367 = vpack.c.bf16 %v340, %v339
      %v368 = vpack.c.bf16 %v342, %v341
      %v369 = vpack.c.bf16 %v344, %v343
      %v370 = vpack.c.bf16 %v346, %v345
      %v371 = vpack.c.bf16 %v348, %v347
      %v372 = vpack.c.bf16 %v350, %v349
      %v373 = vpack.c.bf16 %v352, %v351
      %v374 = vpack.c.bf16 %v354, %v353
      %v375 = vpack.c.bf16 %v356, %v355
      %v376 = vpack.c.bf16 %v358, %v357
      %v377 = vpack.c.bf16 %v360, %v359
      %v378 = vpack.c.bf16 %v362, %v361
      %v379 = vld [vmem:[%s2] sm:$0xf]
      %v380 = vld [vmem:[%s2 + $0x4] sm:$0xf]
      %v381 = vld [vmem:[%s2 + $0x8] sm:$0xf]
      %v382 = vld [vmem:[%s2 + $0xc] sm:$0xf]
      %v383 = vld [vmem:[%s2 + $0x10] sm:$0xf]
      %v384 = vld [vmem:[%s2 + $0x14] sm:$0xf]
      %v385 = vld [vmem:[%s2 + $0x18] sm:$0xf]
      %v386 = vld [vmem:[%s2 + $0x1c] sm:$0xf]
      %v387 = vld [vmem:[%s2 + $0x20] sm:$0xf]
      %v388 = vld [vmem:[%s2 + $0x24] sm:$0xf]
      %v389 = vld [vmem:[%s2 + $0x28] sm:$0xf]
      %v390 = vld [vmem:[%s2 + $0x2c] sm:$0xf]
      %v391 = vld [vmem:[%s2 + $0x30] sm:$0xf]
      %v392 = vld [vmem:[%s2 + $0x34] sm:$0xf]
      %v393 = vld [vmem:[%s2 + $0x38] sm:$0xf]
      %v394 = vld [vmem:[%s2 + $0x3c] sm:$0xf]
      %v411 = vunpack.c.l.b16 %v379
      %v412 = vunpack.c.l.b16 %v380
      %v413 = vunpack.c.l.b16 %v381
      %v414 = vunpack.c.l.b16 %v382
      %v415 = vunpack.c.l.b16 %v383
      %v416 = vunpack.c.l.b16 %v384
      %v417 = vunpack.c.l.b16 %v385
      %v418 = vunpack.c.l.b16 %v386
      %v419 = vunpack.c.l.b16 %v387
      %v420 = vunpack.c.l.b16 %v388
      %v421 = vunpack.c.l.b16 %v389
      %v422 = vunpack.c.l.b16 %v390
      %v423 = vunpack.c.l.b16 %v391
      %v424 = vunpack.c.l.b16 %v392
      %v425 = vunpack.c.l.b16 %v393
      %v426 = vunpack.c.l.b16 %v394
      %v427 = vpack.c.b16 %v412, %v411
      %v428 = vpack.c.b16 %v414, %v413
      %v429 = vpack.c.b16 %v416, %v415
      %v430 = vpack.c.b16 %v418, %v417
      %v431 = vpack.c.b16 %v420, %v419
      %v432 = vpack.c.b16 %v422, %v421
      %v433 = vpack.c.b16 %v424, %v423
      %v434 = vpack.c.b16 %v426, %v425
      %443 = vmatpush.bf16.msra.mxu0 %v434
      %444 = vmatpush.bf16.msra.mxu0 %v433
      %445 = vmatpush.bf16.msra.mxu0 %v432
      %446 = vmatpush.bf16.msra.mxu0 %v431
      %447 = vmatpush.bf16.msra.mxu0 %v430
      %448 = vmatpush.bf16.msra.mxu0 %v429
      %449 = vmatpush.bf16.msra.mxu0 %v428
      %450 = vmatpush.bf16.msra.mxu0 %v427
      %451 = vmatmul.bf16.gmra.mxu0 %v363
      %v452 = vpop.f32.mrf.mxu0
      %v453 = vadd.f32 0.0, %v452
      %v454 = vpop.f32.mrf.mxu0
      %v455 = vadd.f32 0.0, %v454
      %456 = vmatmul.bf16.gmra.mxu0 %v364
      %v457 = vpop.f32.mrf.mxu0
      %v458 = vadd.f32 0.0, %v457
      %v459 = vpop.f32.mrf.mxu0
      %v460 = vadd.f32 0.0, %v459
      %461 = vmatmul.bf16.gmra.mxu0 %v365
      %v462 = vpop.f32.mrf.mxu0
      %v463 = vadd.f32 0.0, %v462
      %v464 = vpop.f32.mrf.mxu0
      %v465 = vadd.f32 0.0, %v464
      %466 = vmatmul.bf16.gmra.mxu0 %v366
      %v467 = vpop.f32.mrf.mxu0
      %v468 = vadd.f32 0.0, %v467
      %v469 = vpop.f32.mrf.mxu0
      %v470 = vadd.f32 0.0, %v469
      %471 = vmatmul.bf16.gmra.mxu0 %v367
      %v472 = vpop.f32.mrf.mxu0
      %v473 = vadd.f32 0.0, %v472
      %v474 = vpop.f32.mrf.mxu0
      %v475 = vadd.f32 0.0, %v474
      %476 = vmatmul.bf16.gmra.mxu0 %v368
      %v477 = vpop.f32.mrf.mxu0
      %v478 = vadd.f32 0.0, %v477
      %v479 = vpop.f32.mrf.mxu0
      %v480 = vadd.f32 0.0, %v479
      %481 = vmatmul.bf16.gmra.mxu0 %v369
      %v482 = vpop.f32.mrf.mxu0
      %v483 = vadd.f32 0.0, %v482
      %v484 = vpop.f32.mrf.mxu0
      %v485 = vadd.f32 0.0, %v484
      %486 = vmatmul.bf16.gmra.mxu0 %v370
      %v487 = vpop.f32.mrf.mxu0
      %v488 = vadd.f32 0.0, %v487
      %v489 = vpop.f32.mrf.mxu0
      %v490 = vadd.f32 0.0, %v489
      %491 = vmatmul.bf16.gmra.mxu0 %v371
      %v492 = vpop.f32.mrf.mxu0
      %v493 = vadd.f32 0.0, %v492
      %v494 = vpop.f32.mrf.mxu0
      %v495 = vadd.f32 0.0, %v494
      %496 = vmatmul.bf16.gmra.mxu0 %v372
      %v497 = vpop.f32.mrf.mxu0
      %v498 = vadd.f32 0.0, %v497
      %v499 = vpop.f32.mrf.mxu0
      %v500 = vadd.f32 0.0, %v499
      %501 = vmatmul.bf16.gmra.mxu0 %v373
      %v502 = vpop.f32.mrf.mxu0
      %v503 = vadd.f32 0.0, %v502
      %v504 = vpop.f32.mrf.mxu0
      %v505 = vadd.f32 0.0, %v504
      %506 = vmatmul.bf16.gmra.mxu0 %v374
      %v507 = vpop.f32.mrf.mxu0
      %v508 = vadd.f32 0.0, %v507
      %v509 = vpop.f32.mrf.mxu0
      %v510 = vadd.f32 0.0, %v509
      %511 = vmatmul.bf16.gmra.mxu0 %v375
      %v512 = vpop.f32.mrf.mxu0
      %v513 = vadd.f32 0.0, %v512
      %v514 = vpop.f32.mrf.mxu0
      %v515 = vadd.f32 0.0, %v514
      %516 = vmatmul.bf16.gmra.mxu0 %v376
      %v517 = vpop.f32.mrf.mxu0
      %v518 = vadd.f32 0.0, %v517
      %v519 = vpop.f32.mrf.mxu0
      %v520 = vadd.f32 0.0, %v519
      %521 = vmatmul.bf16.gmra.mxu0 %v377
      %v522 = vpop.f32.mrf.mxu0
      %v523 = vadd.f32 0.0, %v522
      %v524 = vpop.f32.mrf.mxu0
      %v525 = vadd.f32 0.0, %v524
      %526 = vmatmul.bf16.gmra.mxu0 %v378
      %v527 = vpop.f32.mrf.mxu0
      %v528 = vadd.f32 0.0, %v527
      %v529 = vpop.f32.mrf.mxu0
      %v530 = vadd.f32 0.0, %v529
      %531 = vdwg.mxu0
      %v532 = vld [vmem:[%s3] sm:$0x1]
      %v534 = vperm.slane %v532, 0
      %v536 = vmul.f32 %v453, %v534
      %v537 = vmul.f32 %v455, %v534
      %v538 = vmul.f32 %v458, %v534
      %v539 = vmul.f32 %v460, %v534
      %v540 = vmul.f32 %v463, %v534
      %v541 = vmul.f32 %v465, %v534
      %v542 = vmul.f32 %v468, %v534
      %v543 = vmul.f32 %v470, %v534
      %v544 = vmul.f32 %v473, %v534
      %v545 = vmul.f32 %v475, %v534
      %v546 = vmul.f32 %v478, %v534
      %v547 = vmul.f32 %v480, %v534
      %v548 = vmul.f32 %v483, %v534
      %v549 = vmul.f32 %v485, %v534
      %v550 = vmul.f32 %v488, %v534
      %v551 = vmul.f32 %v490, %v534
      %v552 = vmul.f32 %v493, %v534
      %v553 = vmul.f32 %v495, %v534
      %v554 = vmul.f32 %v498, %v534
      %v555 = vmul.f32 %v500, %v534
      %v556 = vmul.f32 %v503, %v534
      %v557 = vmul.f32 %v505, %v534
      %v558 = vmul.f32 %v508, %v534
      %v559 = vmul.f32 %v510, %v534
      %v560 = vmul.f32 %v513, %v534
      %v561 = vmul.f32 %v515, %v534
      %v562 = vmul.f32 %v518, %v534
      %v563 = vmul.f32 %v520, %v534
      %v564 = vmul.f32 %v523, %v534
      %v565 = vmul.f32 %v525, %v534
      %v566 = vmul.f32 %v528, %v534
      %v567 = vmul.f32 %v530, %v534
      %v568 = vld [vmem:[%s4] sm:$0x1]
      %v570 = vperm.slane %v568, 0
      %v572 = vadd.f32 %v536, %v570
      %v573 = vadd.f32 %v537, %v570
      %v574 = vadd.f32 %v538, %v570
      %v575 = vadd.f32 %v539, %v570
      %v576 = vadd.f32 %v540, %v570
      %v577 = vadd.f32 %v541, %v570
      %v578 = vadd.f32 %v542, %v570
      %v579 = vadd.f32 %v543, %v570
      %v580 = vadd.f32 %v544, %v570
      %v581 = vadd.f32 %v545, %v570
      %v582 = vadd.f32 %v546, %v570
      %v583 = vadd.f32 %v547, %v570
      %v584 = vadd.f32 %v548, %v570
      %v585 = vadd.f32 %v549, %v570
      %v586 = vadd.f32 %v550, %v570
      %v587 = vadd.f32 %v551, %v570
      %v588 = vadd.f32 %v552, %v570
      %v589 = vadd.f32 %v553, %v570
      %v590 = vadd.f32 %v554, %v570
      %v591 = vadd.f32 %v555, %v570
      %v592 = vadd.f32 %v556, %v570
      %v593 = vadd.f32 %v557, %v570
      %v594 = vadd.f32 %v558, %v570
      %v595 = vadd.f32 %v559, %v570
      %v596 = vadd.f32 %v560, %v570
      %v597 = vadd.f32 %v561, %v570
      %v598 = vadd.f32 %v562, %v570
      %v599 = vadd.f32 %v563, %v570
      %v600 = vadd.f32 %v564, %v570
      %v601 = vadd.f32 %v565, %v570
      %v602 = vadd.f32 %v566, %v570
      %v603 = vadd.f32 %v567, %v570
      %v604 = vmax.f32 %v572, 0.0
      %v605 = vmax.f32 %v573, 0.0
      %v606 = vmax.f32 %v574, 0.0
      %v607 = vmax.f32 %v575, 0.0
      %v608 = vmax.f32 %v576, 0.0
      %v609 = vmax.f32 %v577, 0.0
      %v610 = vmax.f32 %v578, 0.0
      %v611 = vmax.f32 %v579, 0.0
      %v612 = vmax.f32 %v580, 0.0
      %v613 = vmax.f32 %v581, 0.0
      %v614 = vmax.f32 %v582, 0.0
      %v615 = vmax.f32 %v583, 0.0
      %v616 = vmax.f32 %v584, 0.0
      %v617 = vmax.f32 %v585, 0.0
      %v618 = vmax.f32 %v586, 0.0
      %v619 = vmax.f32 %v587, 0.0
      %v620 = vmax.f32 %v588, 0.0
      %v621 = vmax.f32 %v589, 0.0
      %v622 = vmax.f32 %v590, 0.0
      %v623 = vmax.f32 %v591, 0.0
      %v624 = vmax.f32 %v592, 0.0
      %v625 = vmax.f32 %v593, 0.0
      %v626 = vmax.f32 %v594, 0.0
      %v627 = vmax.f32 %v595, 0.0
      %v628 = vmax.f32 %v596, 0.0
      %v629 = vmax.f32 %v597, 0.0
      %v630 = vmax.f32 %v598, 0.0
      %v631 = vmax.f32 %v599, 0.0
      %v632 = vmax.f32 %v600, 0.0
      %v633 = vmax.f32 %v601, 0.0
      %v634 = vmax.f32 %v602, 0.0
      %v635 = vmax.f32 %v603, 0.0
      %v636 = vpack.c.bf16 %v605, %v604
      %v637 = vpack.c.bf16 %v607, %v606
      %v638 = vpack.c.bf16 %v609, %v608
      %v639 = vpack.c.bf16 %v611, %v610
      %v640 = vpack.c.bf16 %v613, %v612
      %v641 = vpack.c.bf16 %v615, %v614
      %v642 = vpack.c.bf16 %v617, %v616
      %v643 = vpack.c.bf16 %v619, %v618
      %v644 = vpack.c.bf16 %v621, %v620
      %v645 = vpack.c.bf16 %v623, %v622
      %v646 = vpack.c.bf16 %v625, %v624
      %v647 = vpack.c.bf16 %v627, %v626
      %v648 = vpack.c.bf16 %v629, %v628
      %v649 = vpack.c.bf16 %v631, %v630
      %v650 = vpack.c.bf16 %v633, %v632
      %v651 = vpack.c.bf16 %v635, %v634
      %v652 = vld [vmem:[%s5] sm:$0xf]
      %v653 = vld [vmem:[%s5 + $0x4] sm:$0xf]
      %v654 = vld [vmem:[%s5 + $0x8] sm:$0xf]
      %v655 = vld [vmem:[%s5 + $0xc] sm:$0xf]
      %v656 = vld [vmem:[%s5 + $0x10] sm:$0xf]
      %v657 = vld [vmem:[%s5 + $0x14] sm:$0xf]
      %v658 = vld [vmem:[%s5 + $0x18] sm:$0xf]
      %v659 = vld [vmem:[%s5 + $0x1c] sm:$0xf]
      %v660 = vld [vmem:[%s5 + $0x20] sm:$0xf]
      %v661 = vld [vmem:[%s5 + $0x24] sm:$0xf]
      %v662 = vld [vmem:[%s5 + $0x28] sm:$0xf]
      %v663 = vld [vmem:[%s5 + $0x2c] sm:$0xf]
      %v664 = vld [vmem:[%s5 + $0x30] sm:$0xf]
      %v665 = vld [vmem:[%s5 + $0x34] sm:$0xf]
      %v666 = vld [vmem:[%s5 + $0x38] sm:$0xf]
      %v667 = vld [vmem:[%s5 + $0x3c] sm:$0xf]
      %v684 = vunpack.c.l.b16 %v652
      %v685 = vunpack.c.l.b16 %v653
      %v686 = vunpack.c.l.b16 %v654
      %v687 = vunpack.c.l.b16 %v655
      %v688 = vunpack.c.l.b16 %v656
      %v689 = vunpack.c.l.b16 %v657
      %v690 = vunpack.c.l.b16 %v658
      %v691 = vunpack.c.l.b16 %v659
      %v692 = vunpack.c.l.b16 %v660
      %v693 = vunpack.c.l.b16 %v661
      %v694 = vunpack.c.l.b16 %v662
      %v695 = vunpack.c.l.b16 %v663
      %v696 = vunpack.c.l.b16 %v664
      %v697 = vunpack.c.l.b16 %v665
      %v698 = vunpack.c.l.b16 %v666
      %v699 = vunpack.c.l.b16 %v667
      %v700 = vpack.c.b16 %v685, %v684
      %v701 = vpack.c.b16 %v687, %v686
      %v702 = vpack.c.b16 %v689, %v688
      %v703 = vpack.c.b16 %v691, %v690
      %v704 = vpack.c.b16 %v693, %v692
      %v705 = vpack.c.b16 %v695, %v694
      %v706 = vpack.c.b16 %v697, %v696
      %v707 = vpack.c.b16 %v699, %v698
      %716 = vmatpush.bf16.msra.mxu0 %v707
      %717 = vmatpush.bf16.msra.mxu0 %v706
      %718 = vmatpush.bf16.msra.mxu0 %v705
      %719 = vmatpush.bf16.msra.mxu0 %v704
      %720 = vmatpush.bf16.msra.mxu0 %v703
      %721 = vmatpush.bf16.msra.mxu0 %v702
      %722 = vmatpush.bf16.msra.mxu0 %v701
      %723 = vmatpush.bf16.msra.mxu0 %v700
      %724 = vmatmul.bf16.gmra.mxu0 %v636
      %v725 = vpop.f32.mrf.mxu0
      %v726 = vadd.f32 0.0, %v725
      %v727 = vpop.f32.mrf.mxu0
      %v728 = vadd.f32 0.0, %v727
      %729 = vmatmul.bf16.gmra.mxu0 %v637
      %v730 = vpop.f32.mrf.mxu0
      %v731 = vadd.f32 0.0, %v730
      %v732 = vpop.f32.mrf.mxu0
      %v733 = vadd.f32 0.0, %v732
      %734 = vmatmul.bf16.gmra.mxu0 %v638
      %v735 = vpop.f32.mrf.mxu0
      %v736 = vadd.f32 0.0, %v735
      %v737 = vpop.f32.mrf.mxu0
      %v738 = vadd.f32 0.0, %v737
      %739 = vmatmul.bf16.gmra.mxu0 %v639
      %v740 = vpop.f32.mrf.mxu0
      %v741 = vadd.f32 0.0, %v740
      %v742 = vpop.f32.mrf.mxu0
      %v743 = vadd.f32 0.0, %v742
      %744 = vmatmul.bf16.gmra.mxu0 %v640
      %v745 = vpop.f32.mrf.mxu0
      %v746 = vadd.f32 0.0, %v745
      %v747 = vpop.f32.mrf.mxu0
      %v748 = vadd.f32 0.0, %v747
      %749 = vmatmul.bf16.gmra.mxu0 %v641
      %v750 = vpop.f32.mrf.mxu0
      %v751 = vadd.f32 0.0, %v750
      %v752 = vpop.f32.mrf.mxu0
      %v753 = vadd.f32 0.0, %v752
      %754 = vmatmul.bf16.gmra.mxu0 %v642
      %v755 = vpop.f32.mrf.mxu0
      %v756 = vadd.f32 0.0, %v755
      %v757 = vpop.f32.mrf.mxu0
      %v758 = vadd.f32 0.0, %v757
      %759 = vmatmul.bf16.gmra.mxu0 %v643
      %v760 = vpop.f32.mrf.mxu0
      %v761 = vadd.f32 0.0, %v760
      %v762 = vpop.f32.mrf.mxu0
      %v763 = vadd.f32 0.0, %v762
      %764 = vmatmul.bf16.gmra.mxu0 %v644
      %v765 = vpop.f32.mrf.mxu0
      %v766 = vadd.f32 0.0, %v765
      %v767 = vpop.f32.mrf.mxu0
      %v768 = vadd.f32 0.0, %v767
      %769 = vmatmul.bf16.gmra.mxu0 %v645
      %v770 = vpop.f32.mrf.mxu0
      %v771 = vadd.f32 0.0, %v770
      %v772 = vpop.f32.mrf.mxu0
      %v773 = vadd.f32 0.0, %v772
      %774 = vmatmul.bf16.gmra.mxu0 %v646
      %v775 = vpop.f32.mrf.mxu0
      %v776 = vadd.f32 0.0, %v775
      %v777 = vpop.f32.mrf.mxu0
      %v778 = vadd.f32 0.0, %v777
      %779 = vmatmul.bf16.gmra.mxu0 %v647
      %v780 = vpop.f32.mrf.mxu0
      %v781 = vadd.f32 0.0, %v780
      %v782 = vpop.f32.mrf.mxu0
      %v783 = vadd.f32 0.0, %v782
      %784 = vmatmul.bf16.gmra.mxu0 %v648
      %v785 = vpop.f32.mrf.mxu0
      %v786 = vadd.f32 0.0, %v785
      %v787 = vpop.f32.mrf.mxu0
      %v788 = vadd.f32 0.0, %v787
      %789 = vmatmul.bf16.gmra.mxu0 %v649
      %v790 = vpop.f32.mrf.mxu0
      %v791 = vadd.f32 0.0, %v790
      %v792 = vpop.f32.mrf.mxu0
      %v793 = vadd.f32 0.0, %v792
      %794 = vmatmul.bf16.gmra.mxu0 %v650
      %v795 = vpop.f32.mrf.mxu0
      %v796 = vadd.f32 0.0, %v795
      %v797 = vpop.f32.mrf.mxu0
      %v798 = vadd.f32 0.0, %v797
      %799 = vmatmul.bf16.gmra.mxu0 %v651
      %v800 = vpop.f32.mrf.mxu0
      %v801 = vadd.f32 0.0, %v800
      %v802 = vpop.f32.mrf.mxu0
      %v803 = vadd.f32 0.0, %v802
      %804 = vdwg.mxu0
      %v805 = vld [vmem:[%s6] sm:$0x1]
      %v807 = vperm.slane %v805, 0
      %v809 = vmul.f32 %v726, %v807
      %v810 = vmul.f32 %v728, %v807
      %v811 = vmul.f32 %v731, %v807
      %v812 = vmul.f32 %v733, %v807
      %v813 = vmul.f32 %v736, %v807
      %v814 = vmul.f32 %v738, %v807
      %v815 = vmul.f32 %v741, %v807
      %v816 = vmul.f32 %v743, %v807
      %v817 = vmul.f32 %v746, %v807
      %v818 = vmul.f32 %v748, %v807
      %v819 = vmul.f32 %v751, %v807
      %v820 = vmul.f32 %v753, %v807
      %v821 = vmul.f32 %v756, %v807
      %v822 = vmul.f32 %v758, %v807
      %v823 = vmul.f32 %v761, %v807
      %v824 = vmul.f32 %v763, %v807
      %v825 = vmul.f32 %v766, %v807
      %v826 = vmul.f32 %v768, %v807
      %v827 = vmul.f32 %v771, %v807
      %v828 = vmul.f32 %v773, %v807
      %v829 = vmul.f32 %v776, %v807
      %v830 = vmul.f32 %v778, %v807
      %v831 = vmul.f32 %v781, %v807
      %v832 = vmul.f32 %v783, %v807
      %v833 = vmul.f32 %v786, %v807
      %v834 = vmul.f32 %v788, %v807
      %v835 = vmul.f32 %v791, %v807
      %v836 = vmul.f32 %v793, %v807
      %v837 = vmul.f32 %v796, %v807
      %v838 = vmul.f32 %v798, %v807
      %v839 = vmul.f32 %v801, %v807
      %v840 = vmul.f32 %v803, %v807
      %v841 = vld [vmem:[%s7] sm:$0x1]
      %v843 = vperm.slane %v841, 0
      %v845 = vadd.f32 %v809, %v843
      %v846 = vadd.f32 %v810, %v843
      %v847 = vadd.f32 %v811, %v843
      %v848 = vadd.f32 %v812, %v843
      %v849 = vadd.f32 %v813, %v843
      %v850 = vadd.f32 %v814, %v843
      %v851 = vadd.f32 %v815, %v843
      %v852 = vadd.f32 %v816, %v843
      %v853 = vadd.f32 %v817, %v843
      %v854 = vadd.f32 %v818, %v843
      %v855 = vadd.f32 %v819, %v843
      %v856 = vadd.f32 %v820, %v843
      %v857 = vadd.f32 %v821, %v843
      %v858 = vadd.f32 %v822, %v843
      %v859 = vadd.f32 %v823, %v843
      %v860 = vadd.f32 %v824, %v843
      %v861 = vadd.f32 %v825, %v843
      %v862 = vadd.f32 %v826, %v843
      %v863 = vadd.f32 %v827, %v843
      %v864 = vadd.f32 %v828, %v843
      %v865 = vadd.f32 %v829, %v843
      %v866 = vadd.f32 %v830, %v843
      %v867 = vadd.f32 %v831, %v843
      %v868 = vadd.f32 %v832, %v843
      %v869 = vadd.f32 %v833, %v843
      %v870 = vadd.f32 %v834, %v843
      %v871 = vadd.f32 %v835, %v843
      %v872 = vadd.f32 %v836, %v843
      %v873 = vadd.f32 %v837, %v843
      %v874 = vadd.f32 %v838, %v843
      %v875 = vadd.f32 %v839, %v843
      %v876 = vadd.f32 %v840, %v843
      %v877 = vld [vmem:[%s323] sm:$0xff]
      %v878 = vld [vmem:[%s323 + $0x8] sm:$0xff]
      %v879 = vld [vmem:[%s323 + $0x10] sm:$0xff]
      %v880 = vld [vmem:[%s323 + $0x18] sm:$0xff]
      %v881 = vld [vmem:[%s323 + $0x20] sm:$0xff]
      %v882 = vld [vmem:[%s323 + $0x28] sm:$0xff]
      %v883 = vld [vmem:[%s323 + $0x30] sm:$0xff]
      %v884 = vld [vmem:[%s323 + $0x38] sm:$0xff]
      %v885 = vld [vmem:[%s323 + $0x40] sm:$0xff]
      %v886 = vld [vmem:[%s323 + $0x48] sm:$0xff]
      %v887 = vld [vmem:[%s323 + $0x50] sm:$0xff]
      %v888 = vld [vmem:[%s323 + $0x58] sm:$0xff]
      %v889 = vld [vmem:[%s323 + $0x60] sm:$0xff]
      %v890 = vld [vmem:[%s323 + $0x68] sm:$0xff]
      %v891 = vld [vmem:[%s323 + $0x70] sm:$0xff]
      %v892 = vld [vmem:[%s323 + $0x78] sm:$0xff]
      %v893 = vld [vmem:[%s323 + $0x80] sm:$0xff]
      %v894 = vld [vmem:[%s323 + $0x88] sm:$0xff]
      %v895 = vld [vmem:[%s323 + $0x90] sm:$0xff]
      %v896 = vld [vmem:[%s323 + $0x98] sm:$0xff]
      %v897 = vld [vmem:[%s323 + $0xa0] sm:$0xff]
      %v898 = vld [vmem:[%s323 + $0xa8] sm:$0xff]
      %v899 = vld [vmem:[%s323 + $0xb0] sm:$0xff]
      %v900 = vld [vmem:[%s323 + $0xb8] sm:$0xff]
      %v901 = vld [vmem:[%s323 + $0xc0] sm:$0xff]
      %v902 = vld [vmem:[%s323 + $0xc8] sm:$0xff]
      %v903 = vld [vmem:[%s323 + $0xd0] sm:$0xff]
      %v904 = vld [vmem:[%s323 + $0xd8] sm:$0xff]
      %v905 = vld [vmem:[%s323 + $0xe0] sm:$0xff]
      %v906 = vld [vmem:[%s323 + $0xe8] sm:$0xff]
      %v907 = vld [vmem:[%s323 + $0xf0] sm:$0xff]
      %v908 = vld [vmem:[%s323 + $0xf8] sm:$0xff]
      %v909 = vadd.f32 %v845, %v877
      %v910 = vadd.f32 %v846, %v878
      %v911 = vadd.f32 %v847, %v879
      %v912 = vadd.f32 %v848, %v880
      %v913 = vadd.f32 %v849, %v881
      %v914 = vadd.f32 %v850, %v882
      %v915 = vadd.f32 %v851, %v883
      %v916 = vadd.f32 %v852, %v884
      %v917 = vadd.f32 %v853, %v885
      %v918 = vadd.f32 %v854, %v886
      %v919 = vadd.f32 %v855, %v887
      %v920 = vadd.f32 %v856, %v888
      %v921 = vadd.f32 %v857, %v889
      %v922 = vadd.f32 %v858, %v890
      %v923 = vadd.f32 %v859, %v891
      %v924 = vadd.f32 %v860, %v892
      %v925 = vadd.f32 %v861, %v893
      %v926 = vadd.f32 %v862, %v894
      %v927 = vadd.f32 %v863, %v895
      %v928 = vadd.f32 %v864, %v896
      %v929 = vadd.f32 %v865, %v897
      %v930 = vadd.f32 %v866, %v898
      %v931 = vadd.f32 %v867, %v899
      %v932 = vadd.f32 %v868, %v900
      %v933 = vadd.f32 %v869, %v901
      %v934 = vadd.f32 %v870, %v902
      %v935 = vadd.f32 %v871, %v903
      %v936 = vadd.f32 %v872, %v904
      %v937 = vadd.f32 %v873, %v905
      %v938 = vadd.f32 %v874, %v906
      %v939 = vadd.f32 %v875, %v907
      %v940 = vadd.f32 %v876, %v908
      %v941 = vmax.f32 %v909, 0.0
      %v942 = vmax.f32 %v910, 0.0
      %v943 = vmax.f32 %v911, 0.0
      %v944 = vmax.f32 %v912, 0.0
      %v945 = vmax.f32 %v913, 0.0
      %v946 = vmax.f32 %v914, 0.0
      %v947 = vmax.f32 %v915, 0.0
      %v948 = vmax.f32 %v916, 0.0
      %v949 = vmax.f32 %v917, 0.0
      %v950 = vmax.f32 %v918, 0.0
      %v951 = vmax.f32 %v919, 0.0
      %v952 = vmax.f32 %v920, 0.0
      %v953 = vmax.f32 %v921, 0.0
      %v954 = vmax.f32 %v922, 0.0
      %v955 = vmax.f32 %v923, 0.0
      %v956 = vmax.f32 %v924, 0.0
      %v957 = vmax.f32 %v925, 0.0
      %v958 = vmax.f32 %v926, 0.0
      %v959 = vmax.f32 %v927, 0.0
      %v960 = vmax.f32 %v928, 0.0
      %v961 = vmax.f32 %v929, 0.0
      %v962 = vmax.f32 %v930, 0.0
      %v963 = vmax.f32 %v931, 0.0
      %v964 = vmax.f32 %v932, 0.0
      %v965 = vmax.f32 %v933, 0.0
      %v966 = vmax.f32 %v934, 0.0
      %v967 = vmax.f32 %v935, 0.0
      %v968 = vmax.f32 %v936, 0.0
      %v969 = vmax.f32 %v937, 0.0
      %v970 = vmax.f32 %v938, 0.0
      %v971 = vmax.f32 %v939, 0.0
      %v972 = vmax.f32 %v940, 0.0
      %973 = vst [vmem:[%s329] sm:$0xff] %v941
      %974 = vst [vmem:[%s329 + $0x8] sm:$0xff] %v942
      %975 = vst [vmem:[%s329 + $0x10] sm:$0xff] %v943
      %976 = vst [vmem:[%s329 + $0x18] sm:$0xff] %v944
      %977 = vst [vmem:[%s329 + $0x20] sm:$0xff] %v945
      %978 = vst [vmem:[%s329 + $0x28] sm:$0xff] %v946
      %979 = vst [vmem:[%s329 + $0x30] sm:$0xff] %v947
      %980 = vst [vmem:[%s329 + $0x38] sm:$0xff] %v948
      %981 = vst [vmem:[%s329 + $0x40] sm:$0xff] %v949
      %982 = vst [vmem:[%s329 + $0x48] sm:$0xff] %v950
      %983 = vst [vmem:[%s329 + $0x50] sm:$0xff] %v951
      %984 = vst [vmem:[%s329 + $0x58] sm:$0xff] %v952
      %985 = vst [vmem:[%s329 + $0x60] sm:$0xff] %v953
      %986 = vst [vmem:[%s329 + $0x68] sm:$0xff] %v954
      %987 = vst [vmem:[%s329 + $0x70] sm:$0xff] %v955
      %988 = vst [vmem:[%s329 + $0x78] sm:$0xff] %v956
      %989 = vst [vmem:[%s329 + $0x80] sm:$0xff] %v957
      %990 = vst [vmem:[%s329 + $0x88] sm:$0xff] %v958
      %991 = vst [vmem:[%s329 + $0x90] sm:$0xff] %v959
      %992 = vst [vmem:[%s329 + $0x98] sm:$0xff] %v960
      %993 = vst [vmem:[%s329 + $0xa0] sm:$0xff] %v961
      %994 = vst [vmem:[%s329 + $0xa8] sm:$0xff] %v962
      %995 = vst [vmem:[%s329 + $0xb0] sm:$0xff] %v963
      %996 = vst [vmem:[%s329 + $0xb8] sm:$0xff] %v964
      %997 = vst [vmem:[%s329 + $0xc0] sm:$0xff] %v965
      %998 = vst [vmem:[%s329 + $0xc8] sm:$0xff] %v966
      %999 = vst [vmem:[%s329 + $0xd0] sm:$0xff] %v967
      %1000 = vst [vmem:[%s329 + $0xd8] sm:$0xff] %v968
      %1001 = vst [vmem:[%s329 + $0xe0] sm:$0xff] %v969
      %1002 = vst [vmem:[%s329 + $0xe8] sm:$0xff] %v970
      %1003 = vst [vmem:[%s329 + $0xf0] sm:$0xff] %v971
      %1004 = vst [vmem:[%s329 + $0xf8] sm:$0xff] %v972
      %s1005 = smul.u32 32, %s19
      %p1006 = scmp.lt.s32.totalorder %s1005, 63
      %s1007 = scalar_select %p1006, %s1005, 63
      %s1008 = smul.addr %s1007, 8
      %s1009 = scalar_lea.vmem %s8, %s1008
      // Predicated region
      $region53: #{_lambda_.3} parent=51 // pred_check
        %p1010 = pneg %p215
      $region54: #{_lambda_.3} parent=51 // pred_check_branch
        %1012 = sbr.rel (%p1010) target = $region56
      $region55: #{_lambda_.3} parent=51 // pred_region
        %s1013 = smul.u32 32, %s19
      $region56: #{_lambda_.3} parent=51 // pred_fallthru
        _
    $region52: #{_lambda_.3} parent=5 // pred_fallthru
      _
    %p1014 = scmp.le.s32.totalorder 2, %s14
    // Predicated region
    $region57: #{_lambda_.3} parent=5 // pred_check
      %p1015 = pneg %p1014
    $region58: #{_lambda_.3} parent=5 // pred_check_branch
      %1017 = sbr.rel (%p1015) target = $region60
    $region59: #{_lambda_.3} parent=5 // pred_region
      %s1018 = ssub.s32 %s14, 2
      // Predicated region
      $region61: #{_lambda_.3} parent=59 // pred_check
        %p1019 = pneg %p221
      $region62: #{_lambda_.3} parent=59 // pred_check_branch
        %1021 = sbr.rel (%p1019) target = $region64
      $region63: #{_lambda_.3} parent=59 // pred_region
        %s1022 = smul.u32 32, %s20
        %p1023 = scmp.lt.s32.totalorder %s1022, 63
        %s1024 = scalar_select %p1023, %s1022, 63
        %s1025 = smul.addr %s1024, 8
        %s1026 = scalar_lea.vmem %s8, %s1025
      $region64: #{_lambda_.3} parent=59 // pred_fallthru
        _
    $region60: #{_lambda_.3} parent=5 // pred_fallthru
      _
  $region6: #{_lambda_.3} parent=0 // loop_footer
    %s18 = sadd.s32 1, %s14
  $region7: #{_lambda_.3} parent=0 // loop_footer_branch
    %13 = sbr.rel target = $region3
  $region8: #{_lambda_.3} parent=0 // loop_exit
    _

</llo_original>
